<compile_context>
chip_gen: v7x
topology: tpu7x:2x2x1
jax: 0.10.0
libtpu: 0.0.40
codegen_flags: <defaults>
</compile_context>

<pallas_src>
import functools

import jax
import jax.numpy as jnp
from jax import lax
from jax.experimental import pallas as pl
from jax.experimental.pallas import tpu as pltpu


def _round_up(n, m):
    return ((n + m - 1) // m) * m


def _pad_axis(a, axis, target):
    pad = target - a.shape[axis]
    if pad == 0:
        return a
    widths = [(0, 0)] * a.ndim
    widths[axis] = (0, pad)
    return jnp.pad(a, widths)


def _rnn_kernel(num_layers, seq_len, *refs):
    """refs = (x, h0, [w_ih_l, w_hh_l, b_l] * L, w_dec, b_dec,
               decoded_out, hidden_out, seq_scratch).

    All feature dims are pre-padded to (8,128)-friendly sizes; weights are
    pre-transposed ((in,H)/(H,H)/(H,O)); b_l = b_ih_l + b_hh_l as a (1,H) row.
    """
    n_w = 3 * num_layers
    x_ref, h0_ref = refs[0], refs[1]
    w_refs = refs[2:2 + n_w]
    w_dec_ref, b_dec_ref = refs[2 + n_w], refs[3 + n_w]
    decoded_ref, hidden_ref = refs[4 + n_w], refs[5 + n_w]
    seq_ref = refs[6 + n_w]                      # VMEM scratch (T, Bp, Hp)

    T = seq_len
    Bp = seq_ref.shape[1]
    Hp = seq_ref.shape[2]
    # Fully unroll short sequences; otherwise unroll by 8 for LLO overlap.
    unroll = True if T <= 16 else 8

    for l in range(num_layers):                  # static Python loop over layers
        w_ih = w_refs[3 * l][...]                # (in_p, Hp)
        w_hh = w_refs[3 * l + 1][...]            # (Hp, Hp)
        b = w_refs[3 * l + 2][...]               # (1, Hp)  = b_ih + b_hh

        # ---- hoisted input projection: one big MXU-friendly matmul ---------
        layer_in = x_ref[...] if l == 0 else seq_ref[...]
        in_dim = layer_in.shape[-1]
        pre = jnp.dot(layer_in.reshape(T * Bp, in_dim), w_ih,
                      preferred_element_type=jnp.float32) + b
        seq_ref[...] = pre.reshape(T, Bp, Hp)    # single lane-dense slab write

        # ---- serial recurrence: only h @ W_hh + pre[t], then ReLU -----------
        def step(t, h, w_hh=w_hh):
            h_new = jnp.maximum(
                seq_ref[t]
                + jnp.dot(h, w_hh, preferred_element_type=jnp.float32),
                0.0)
            seq_ref[t] = h_new                   # in-place: feeds the next layer
            return h_new

        h_final = lax.fori_loop(0, T, step, h0_ref[l], unroll=unroll)
        hidden_ref[l] = h_final                  # final hidden state of layer l

    # ---- decoder: one fused matmul + tanh, single lane-dense slab store ----
    w_dec = w_dec_ref[...]                       # (Hp, Op)
    b_dec = b_dec_ref[...]                       # (1, Op)
    out = jnp.tanh(
        jnp.dot(seq_ref[...].reshape(T * Bp, Hp), w_dec,
                preferred_element_type=jnp.float32) + b_dec)
    decoded_ref[...] = out.reshape(T, Bp, w_dec.shape[1])


def rnn_model_forward(x, h0, params, num_outputs):
    """Pallas equivalent of RNNModel.forward(x, h0) -> (decoded, hidden)."""
    T, B, F = x.shape
    L, _, H = h0.shape
    O = num_outputs

    SUB, LANE = 8, 128                           # f32 sublane / lane widths
    Bp = _round_up(B, SUB)
    Fp = _round_up(F, LANE)
    Hp = _round_up(H, LANE)
    Op = _round_up(O, LANE)

    xp = _pad_axis(_pad_axis(x.astype(jnp.float32), 1, Bp), 2, Fp)
    h0p = _pad_axis(_pad_axis(h0.astype(jnp.float32), 1, Bp), 2, Hp)

    flat_inputs = [xp, h0p]
    for l in range(L):
        in_pad = Fp if l == 0 else Hp
        w_ih = params[f"w_ih_{l}"].astype(jnp.float32).T            # (in, H)
        w_hh = params[f"w_hh_{l}"].astype(jnp.float32).T            # (H, H)
        b = (params[f"b_ih_{l}"] + params[f"b_hh_{l}"]).astype(
            jnp.float32).reshape(1, -1)
        flat_inputs += [
            _pad_axis(_pad_axis(w_ih, 0, in_pad), 1, Hp),           # (in_p, Hp)
            _pad_axis(_pad_axis(w_hh, 0, Hp), 1, Hp),               # (Hp, Hp)
            _pad_axis(b, 1, Hp),                                    # (1, Hp)
        ]
    flat_inputs += [
        _pad_axis(_pad_axis(params["w_dec"].astype(jnp.float32).T, 0, Hp),
                  1, Op),                                           # (Hp, Op)
        _pad_axis(params["b_dec"].astype(jnp.float32).reshape(1, -1),
                  1, Op),                                           # (1, Op)
    ]

    out_shapes = (
        jax.ShapeDtypeStruct((T, Bp, Op), jnp.float32),   # decoded (padded)
        jax.ShapeDtypeStruct((L, Bp, Hp), jnp.float32),   # hidden  (padded)
    )

    # Explicit VMEM budget from actual footprint; capped so it remains valid on
    # v7x (64 MiB/TC) while leaving room for compiler scratch on v5e/v6e too.
    in_bytes = sum(int(a.size) * a.dtype.itemsize for a in flat_inputs)
    out_bytes = (T * Bp * Op + L * Bp * Hp) * 4
    scratch_bytes = T * Bp * Hp * 4
    needed = in_bytes + out_bytes + scratch_bytes
    vmem_limit = int(min(48 * (1 << 20), max(16 * (1 << 20), 3 * needed)))
    # TODO(synk): for very large T (seq scratch no longer VMEM-resident, esp. on
    # v7x), chunk the time axis and stream x / decoded via pltpu.emit_pipeline;
    # likewise a "parallel" batch grid axis would exploit the 2 TensorCores once
    # B is large enough to split into sublane-aligned blocks.

    vmem = pltpu.MemorySpace.VMEM
    kernel = functools.partial(_rnn_kernel, L, T)
    decoded_p, hidden_p = pl.pallas_call(
        kernel,
        out_shape=out_shapes,
        in_specs=[pl.BlockSpec(memory_space=vmem) for _ in flat_inputs],
        out_specs=(pl.BlockSpec(memory_space=vmem),
                   pl.BlockSpec(memory_space=vmem)),
        scratch_shapes=[pltpu.VMEM((T, Bp, Hp), jnp.float32)],
        compiler_params=pltpu.CompilerParams(vmem_limit_bytes=vmem_limit),
    )(*flat_inputs)

    # Slice the padding off.
    return decoded_p[:, :B, :O], hidden_p[:, :B, :H]


# ---------------- pure-JAX reference (for correctness check) ----------------
def rnn_model_reference(x, h0, params):
    T = x.shape[0]
    L = h0.shape[0]
    layer_in = x
    finals = []
    for l in range(L):
        w_ih = params[f"w_ih_{l}"]
        w_hh = params[f"w_hh_{l}"]
        b = params[f"b_ih_{l}"] + params[f"b_hh_{l}"]
        h = h0[l]
        outs = []
        for t in range(T):
            h = jnp.maximum(layer_in[t] @ w_ih.T + h @ w_hh.T + b, 0.0)
            outs.append(h)
        layer_in = jnp.stack(outs)
        finals.append(h)
    decoded = jnp.tanh(layer_in @ params["w_dec"].T + params["b_dec"])
    return decoded, jnp.stack(finals)


if __name__ == "__main__":
    # Small shapes consistent with the module's forward (time-major like nn.RNN).
    T, B = 8, 2                 # seq_len, batch
    num_inputs, num_hidden, num_layers, num_outputs = 4, 32, 2, 4

    key = jax.random.PRNGKey(0)
    ks = iter(jax.random.split(key, 4 * num_layers + 6))
    bound = 1.0 / jnp.sqrt(num_hidden)

    params = {}
    for l in range(num_layers):
        in_dim = num_inputs if l == 0 else num_hidden
        params[f"w_ih_{l}"] = jax.random.uniform(
            next(ks), (num_hidden, in_dim), jnp.float32, -bound, bound)
        params[f"w_hh_{l}"] = jax.random.uniform(
            next(ks), (num_hidden, num_hidden), jnp.float32, -bound, bound)
        params[f"b_ih_{l}"] = jax.random.uniform(
            next(ks), (num_hidden,), jnp.float32, -bound, bound)
        params[f"b_hh_{l}"] = jax.random.uniform(
            next(ks), (num_hidden,), jnp.float32, -bound, bound)
    params["w_dec"] = jax.random.uniform(
        next(ks), (num_outputs, num_hidden), jnp.float32, -bound, bound)
    params["b_dec"] = jax.random.uniform(
        next(ks), (num_outputs,), jnp.float32, -bound, bound)

    x = jax.random.normal(next(ks), (T, B, num_inputs), jnp.float32)
    h0 = jax.random.normal(next(ks), (num_layers, B, num_hidden), jnp.float32)

    decoded, hidden = rnn_model_forward(x, h0, params, num_outputs)
    decoded = jax.block_until_ready(decoded)
    hidden = jax.block_until_ready(hidden)

    dec_ref, hid_ref = rnn_model_reference(x, h0, params)
    assert decoded.shape == (T, B, num_outputs)
    assert hidden.shape == (num_layers, B, num_hidden)
    assert jnp.allclose(decoded, dec_ref, atol=1e-5, rtol=1e-5)
    assert jnp.allclose(hidden, hid_ref, atol=1e-5, rtol=1e-5)

    print("KERNEL_OK")
</pallas_src>

<mosaic_0001>
module attributes {stable_mosaic.version = 11 : i64} {
  func.func @_rnn_kernel(%arg0: memref<8x8x128xf32, #tpu.memory_space<vmem>>, %arg1: memref<2x8x128xf32, #tpu.memory_space<vmem>>, %arg2: memref<128x128xf32, #tpu.memory_space<vmem>>, %arg3: memref<128x128xf32, #tpu.memory_space<vmem>>, %arg4: memref<1x128xf32, #tpu.memory_space<vmem>>, %arg5: memref<128x128xf32, #tpu.memory_space<vmem>>, %arg6: memref<128x128xf32, #tpu.memory_space<vmem>>, %arg7: memref<1x128xf32, #tpu.memory_space<vmem>>, %arg8: memref<128x128xf32, #tpu.memory_space<vmem>>, %arg9: memref<1x128xf32, #tpu.memory_space<vmem>>, %arg10: memref<8x8x128xf32, #tpu.memory_space<vmem>>, %arg11: memref<2x8x128xf32, #tpu.memory_space<vmem>>, %arg12: memref<8x8x128xf32, #tpu.memory_space<vmem>>) attributes {dimension_semantics = [], scalar_prefetch = 0 : i64, scratch_operands = 1 : i64, tpu.core_type = #tpu.core_type<tc>} {
    %c0 = arith.constant 0 : index
    %c0_0 = arith.constant 0 : index
    %0 = vector.load %arg2[%c0, %c0_0] : memref<128x128xf32, #tpu.memory_space<vmem>>, vector<128x128xf32>
    %c0_1 = arith.constant 0 : index
    %c0_2 = arith.constant 0 : index
    %1 = vector.load %arg3[%c0_1, %c0_2] : memref<128x128xf32, #tpu.memory_space<vmem>>, vector<128x128xf32>
    %c0_3 = arith.constant 0 : index
    %c0_4 = arith.constant 0 : index
    %2 = vector.load %arg4[%c0_3, %c0_4] : memref<1x128xf32, #tpu.memory_space<vmem>>, vector<1x128xf32>
    %c0_5 = arith.constant 0 : index
    %c0_6 = arith.constant 0 : index
    %c0_7 = arith.constant 0 : index
    %3 = vector.load %arg0[%c0_5, %c0_6, %c0_7] : memref<8x8x128xf32, #tpu.memory_space<vmem>>, vector<8x8x128xf32>
    %4 = vector.shape_cast %3 : vector<8x8x128xf32> to vector<64x128xf32>
    %cst = arith.constant dense<0.000000e+00> : vector<64x128xf32>
    %5 = tpu.matmul %4, %0, %cst {dimension_numbers = #tpu.dot_dimension_numbers<[1], [0], [0], [1], [0, 0, 1, 1], [], []>} : vector<64x128xf32>, vector<128x128xf32>, vector<64x128xf32> -> vector<64x128xf32>
    %6 = vector.broadcast %2 : vector<1x128xf32> to vector<64x128xf32>
    %7 = arith.addf %5, %6 : vector<64x128xf32>
    %8 = vector.shape_cast %7 : vector<64x128xf32> to vector<8x8x128xf32>
    %c0_8 = arith.constant 0 : index
    %c0_9 = arith.constant 0 : index
    %c0_10 = arith.constant 0 : index
    %9 = vector.load %arg12[%c0_8, %c0_9, %c0_10] : memref<8x8x128xf32, #tpu.memory_space<vmem>>, vector<8x8x128xf32>
    tpu.vector_store %arg12[%c0_8, %c0_9, %c0_10], %8 {strides = array<i32>} : memref<8x8x128xf32, #tpu.memory_space<vmem>>, vector<8x8x128xf32>,
    %c0_11 = arith.constant 0 : index
    %c0_12 = arith.constant 0 : index
    %c0_13 = arith.constant 0 : index
    %10 = vector.load %arg1[%c0_11, %c0_12, %c0_13] : memref<2x8x128xf32, #tpu.memory_space<vmem>>, vector<1x8x128xf32>
    %11 = vector.shape_cast %10 : vector<1x8x128xf32> to vector<8x128xf32>
    %c0_i32 = arith.constant 0 : i32
    %12 = arith.index_cast %c0_i32 : i32 to index
    %c0_14 = arith.constant 0 : index
    %c0_15 = arith.constant 0 : index
    %13 = vector.load %arg12[%12, %c0_14, %c0_15] : memref<8x8x128xf32, #tpu.memory_space<vmem>>, vector<1x8x128xf32>
    %14 = vector.shape_cast %13 : vector<1x8x128xf32> to vector<8x128xf32>
    %cst_16 = arith.constant dense<0.000000e+00> : vector<8x128xf32>
    %15 = tpu.matmul %11, %1, %cst_16 {dimension_numbers = #tpu.dot_dimension_numbers<[1], [0], [0], [1], [0, 0, 1, 1], [], []>} : vector<8x128xf32>, vector<128x128xf32>, vector<8x128xf32> -> vector<8x128xf32>
    %16 = arith.addf %14, %15 : vector<8x128xf32>
    %cst_17 = arith.constant 0.000000e+00 : f32
    %17 = vector.broadcast %cst_17 : f32 to vector<8x128xf32>
    %18 = arith.maximumf %16, %17 : vector<8x128xf32>
    %19 = arith.index_cast %c0_i32 : i32 to index
    %c0_18 = arith.constant 0 : index
    %c0_19 = arith.constant 0 : index
    %20 = vector.load %arg12[%19, %c0_18, %c0_19] : memref<8x8x128xf32, #tpu.memory_space<vmem>>, vector<1x8x128xf32>
    %21 = vector.shape_cast %20 : vector<1x8x128xf32> to vector<8x128xf32>
    %22 = vector.shape_cast %18 : vector<8x128xf32> to vector<1x8x128xf32>
    tpu.vector_store %arg12[%19, %c0_18, %c0_19], %22 {strides = array<i32>} : memref<8x8x128xf32, #tpu.memory_space<vmem>>, vector<1x8x128xf32>,
    %c1_i32 = arith.constant 1 : i32
    %23 = arith.index_cast %c1_i32 : i32 to index
    %c0_20 = arith.constant 0 : index
    %c0_21 = arith.constant 0 : index
    %24 = vector.load %arg12[%23, %c0_20, %c0_21] : memref<8x8x128xf32, #tpu.memory_space<vmem>>, vector<1x8x128xf32>
    %25 = vector.shape_cast %24 : vector<1x8x128xf32> to vector<8x128xf32>
    %cst_22 = arith.constant dense<0.000000e+00> : vector<8x128xf32>
    %26 = tpu.matmul %18, %1, %cst_22 {dimension_numbers = #tpu.dot_dimension_numbers<[1], [0], [0], [1], [0, 0, 1, 1], [], []>} : vector<8x128xf32>, vector<128x128xf32>, vector<8x128xf32> -> vector<8x128xf32>
    %27 = arith.addf %25, %26 : vector<8x128xf32>
    %cst_23 = arith.constant 0.000000e+00 : f32
    %28 = vector.broadcast %cst_23 : f32 to vector<8x128xf32>
    %29 = arith.maximumf %27, %28 : vector<8x128xf32>
    %30 = arith.index_cast %c1_i32 : i32 to index
    %c0_24 = arith.constant 0 : index
    %c0_25 = arith.constant 0 : index
    %31 = vector.load %arg12[%30, %c0_24, %c0_25] : memref<8x8x128xf32, #tpu.memory_space<vmem>>, vector<1x8x128xf32>
    %32 = vector.shape_cast %31 : vector<1x8x128xf32> to vector<8x128xf32>
    %33 = vector.shape_cast %29 : vector<8x128xf32> to vector<1x8x128xf32>
    tpu.vector_store %arg12[%30, %c0_24, %c0_25], %33 {strides = array<i32>} : memref<8x8x128xf32, #tpu.memory_space<vmem>>, vector<1x8x128xf32>,
    %c2_i32 = arith.constant 2 : i32
    %34 = arith.index_cast %c2_i32 : i32 to index
    %c0_26 = arith.constant 0 : index
    %c0_27 = arith.constant 0 : index
    %35 = vector.load %arg12[%34, %c0_26, %c0_27] : memref<8x8x128xf32, #tpu.memory_space<vmem>>, vector<1x8x128xf32>
    %36 = vector.shape_cast %35 : vector<1x8x128xf32> to vector<8x128xf32>
    %cst_28 = arith.constant dense<0.000000e+00> : vector<8x128xf32>
    %37 = tpu.matmul %29, %1, %cst_28 {dimension_numbers = #tpu.dot_dimension_numbers<[1], [0], [0], [1], [0, 0, 1, 1], [], []>} : vector<8x128xf32>, vector<128x128xf32>, vector<8x128xf32> -> vector<8x128xf32>
    %38 = arith.addf %36, %37 : vector<8x128xf32>
    %cst_29 = arith.constant 0.000000e+00 : f32
    %39 = vector.broadcast %cst_29 : f32 to vector<8x128xf32>
    %40 = arith.maximumf %38, %39 : vector<8x128xf32>
    %41 = arith.index_cast %c2_i32 : i32 to index
    %c0_30 = arith.constant 0 : index
    %c0_31 = arith.constant 0 : index
    %42 = vector.load %arg12[%41, %c0_30, %c0_31] : memref<8x8x128xf32, #tpu.memory_space<vmem>>, vector<1x8x128xf32>
    %43 = vector.shape_cast %42 : vector<1x8x128xf32> to vector<8x128xf32>
    %44 = vector.shape_cast %40 : vector<8x128xf32> to vector<1x8x128xf32>
    tpu.vector_store %arg12[%41, %c0_30, %c0_31], %44 {strides = array<i32>} : memref<8x8x128xf32, #tpu.memory_space<vmem>>, vector<1x8x128xf32>,
    %c3_i32 = arith.constant 3 : i32
    %45 = arith.index_cast %c3_i32 : i32 to index
    %c0_32 = arith.constant 0 : index
    %c0_33 = arith.constant 0 : index
    %46 = vector.load %arg12[%45, %c0_32, %c0_33] : memref<8x8x128xf32, #tpu.memory_space<vmem>>, vector<1x8x128xf32>
    %47 = vector.shape_cast %46 : vector<1x8x128xf32> to vector<8x128xf32>
    %cst_34 = arith.constant dense<0.000000e+00> : vector<8x128xf32>
    %48 = tpu.matmul %40, %1, %cst_34 {dimension_numbers = #tpu.dot_dimension_numbers<[1], [0], [0], [1], [0, 0, 1, 1], [], []>} : vector<8x128xf32>, vector<128x128xf32>, vector<8x128xf32> -> vector<8x128xf32>
    %49 = arith.addf %47, %48 : vector<8x128xf32>
    %cst_35 = arith.constant 0.000000e+00 : f32
    %50 = vector.broadcast %cst_35 : f32 to vector<8x128xf32>
    %51 = arith.maximumf %49, %50 : vector<8x128xf32>
    %52 = arith.index_cast %c3_i32 : i32 to index
    %c0_36 = arith.constant 0 : index
    %c0_37 = arith.constant 0 : index
    %53 = vector.load %arg12[%52, %c0_36, %c0_37] : memref<8x8x128xf32, #tpu.memory_space<vmem>>, vector<1x8x128xf32>
    %54 = vector.shape_cast %53 : vector<1x8x128xf32> to vector<8x128xf32>
    %55 = vector.shape_cast %51 : vector<8x128xf32> to vector<1x8x128xf32>
    tpu.vector_store %arg12[%52, %c0_36, %c0_37], %55 {strides = array<i32>} : memref<8x8x128xf32, #tpu.memory_space<vmem>>, vector<1x8x128xf32>,
    %c4_i32 = arith.constant 4 : i32
    %56 = arith.index_cast %c4_i32 : i32 to index
    %c0_38 = arith.constant 0 : index
    %c0_39 = arith.constant 0 : index
    %57 = vector.load %arg12[%56, %c0_38, %c0_39] : memref<8x8x128xf32, #tpu.memory_space<vmem>>, vector<1x8x128xf32>
    %58 = vector.shape_cast %57 : vector<1x8x128xf32> to vector<8x128xf32>
    %cst_40 = arith.constant dense<0.000000e+00> : vector<8x128xf32>
    %59 = tpu.matmul %51, %1, %cst_40 {dimension_numbers = #tpu.dot_dimension_numbers<[1], [0], [0], [1], [0, 0, 1, 1], [], []>} : vector<8x128xf32>, vector<128x128xf32>, vector<8x128xf32> -> vector<8x128xf32>
    %60 = arith.addf %58, %59 : vector<8x128xf32>
    %cst_41 = arith.constant 0.000000e+00 : f32
    %61 = vector.broadcast %cst_41 : f32 to vector<8x128xf32>
    %62 = arith.maximumf %60, %61 : vector<8x128xf32>
    %63 = arith.index_cast %c4_i32 : i32 to index
    %c0_42 = arith.constant 0 : index
    %c0_43 = arith.constant 0 : index
    %64 = vector.load %arg12[%63, %c0_42, %c0_43] : memref<8x8x128xf32, #tpu.memory_space<vmem>>, vector<1x8x128xf32>
    %65 = vector.shape_cast %64 : vector<1x8x128xf32> to vector<8x128xf32>
    %66 = vector.shape_cast %62 : vector<8x128xf32> to vector<1x8x128xf32>
    tpu.vector_store %arg12[%63, %c0_42, %c0_43], %66 {strides = array<i32>} : memref<8x8x128xf32, #tpu.memory_space<vmem>>, vector<1x8x128xf32>,
    %c5_i32 = arith.constant 5 : i32
    %67 = arith.index_cast %c5_i32 : i32 to index
    %c0_44 = arith.constant 0 : index
    %c0_45 = arith.constant 0 : index
    %68 = vector.load %arg12[%67, %c0_44, %c0_45] : memref<8x8x128xf32, #tpu.memory_space<vmem>>, vector<1x8x128xf32>
    %69 = vector.shape_cast %68 : vector<1x8x128xf32> to vector<8x128xf32>
    %cst_46 = arith.constant dense<0.000000e+00> : vector<8x128xf32>
    %70 = tpu.matmul %62, %1, %cst_46 {dimension_numbers = #tpu.dot_dimension_numbers<[1], [0], [0], [1], [0, 0, 1, 1], [], []>} : vector<8x128xf32>, vector<128x128xf32>, vector<8x128xf32> -> vector<8x128xf32>
    %71 = arith.addf %69, %70 : vector<8x128xf32>
    %cst_47 = arith.constant 0.000000e+00 : f32
    %72 = vector.broadcast %cst_47 : f32 to vector<8x128xf32>
    %73 = arith.maximumf %71, %72 : vector<8x128xf32>
    %74 = arith.index_cast %c5_i32 : i32 to index
    %c0_48 = arith.constant 0 : index
    %c0_49 = arith.constant 0 : index
    %75 = vector.load %arg12[%74, %c0_48, %c0_49] : memref<8x8x128xf32, #tpu.memory_space<vmem>>, vector<1x8x128xf32>
    %76 = vector.shape_cast %75 : vector<1x8x128xf32> to vector<8x128xf32>
    %77 = vector.shape_cast %73 : vector<8x128xf32> to vector<1x8x128xf32>
    tpu.vector_store %arg12[%74, %c0_48, %c0_49], %77 {strides = array<i32>} : memref<8x8x128xf32, #tpu.memory_space<vmem>>, vector<1x8x128xf32>,
    %c6_i32 = arith.constant 6 : i32
    %78 = arith.index_cast %c6_i32 : i32 to index
    %c0_50 = arith.constant 0 : index
    %c0_51 = arith.constant 0 : index
    %79 = vector.load %arg12[%78, %c0_50, %c0_51] : memref<8x8x128xf32, #tpu.memory_space<vmem>>, vector<1x8x128xf32>
    %80 = vector.shape_cast %79 : vector<1x8x128xf32> to vector<8x128xf32>
    %cst_52 = arith.constant dense<0.000000e+00> : vector<8x128xf32>
    %81 = tpu.matmul %73, %1, %cst_52 {dimension_numbers = #tpu.dot_dimension_numbers<[1], [0], [0], [1], [0, 0, 1, 1], [], []>} : vector<8x128xf32>, vector<128x128xf32>, vector<8x128xf32> -> vector<8x128xf32>
    %82 = arith.addf %80, %81 : vector<8x128xf32>
    %cst_53 = arith.constant 0.000000e+00 : f32
    %83 = vector.broadcast %cst_53 : f32 to vector<8x128xf32>
    %84 = arith.maximumf %82, %83 : vector<8x128xf32>
    %85 = arith.index_cast %c6_i32 : i32 to index
    %c0_54 = arith.constant 0 : index
    %c0_55 = arith.constant 0 : index
    %86 = vector.load %arg12[%85, %c0_54, %c0_55] : memref<8x8x128xf32, #tpu.memory_space<vmem>>, vector<1x8x128xf32>
    %87 = vector.shape_cast %86 : vector<1x8x128xf32> to vector<8x128xf32>
    %88 = vector.shape_cast %84 : vector<8x128xf32> to vector<1x8x128xf32>
    tpu.vector_store %arg12[%85, %c0_54, %c0_55], %88 {strides = array<i32>} : memref<8x8x128xf32, #tpu.memory_space<vmem>>, vector<1x8x128xf32>,
    %c7_i32 = arith.constant 7 : i32
    %89 = arith.index_cast %c7_i32 : i32 to index
    %c0_56 = arith.constant 0 : index
    %c0_57 = arith.constant 0 : index
    %90 = vector.load %arg12[%89, %c0_56, %c0_57] : memref<8x8x128xf32, #tpu.memory_space<vmem>>, vector<1x8x128xf32>
    %91 = vector.shape_cast %90 : vector<1x8x128xf32> to vector<8x128xf32>
    %cst_58 = arith.constant dense<0.000000e+00> : vector<8x128xf32>
    %92 = tpu.matmul %84, %1, %cst_58 {dimension_numbers = #tpu.dot_dimension_numbers<[1], [0], [0], [1], [0, 0, 1, 1], [], []>} : vector<8x128xf32>, vector<128x128xf32>, vector<8x128xf32> -> vector<8x128xf32>
    %93 = arith.addf %91, %92 : vector<8x128xf32>
    %cst_59 = arith.constant 0.000000e+00 : f32
    %94 = vector.broadcast %cst_59 : f32 to vector<8x128xf32>
    %95 = arith.maximumf %93, %94 : vector<8x128xf32>
    %96 = arith.index_cast %c7_i32 : i32 to index
    %c0_60 = arith.constant 0 : index
    %c0_61 = arith.constant 0 : index
    %97 = vector.load %arg12[%96, %c0_60, %c0_61] : memref<8x8x128xf32, #tpu.memory_space<vmem>>, vector<1x8x128xf32>
    %98 = vector.shape_cast %97 : vector<1x8x128xf32> to vector<8x128xf32>
    %99 = vector.shape_cast %95 : vector<8x128xf32> to vector<1x8x128xf32>
    tpu.vector_store %arg12[%96, %c0_60, %c0_61], %99 {strides = array<i32>} : memref<8x8x128xf32, #tpu.memory_space<vmem>>, vector<1x8x128xf32>,
    %c8_i32 = arith.constant 8 : i32
    %c0_62 = arith.constant 0 : index
    %c0_63 = arith.constant 0 : index
    %c0_64 = arith.constant 0 : index
    %100 = vector.load %arg11[%c0_62, %c0_63, %c0_64] : memref<2x8x128xf32, #tpu.memory_space<vmem>>, vector<1x8x128xf32>
    %101 = vector.shape_cast %100 : vector<1x8x128xf32> to vector<8x128xf32>
    %102 = vector.shape_cast %95 : vector<8x128xf32> to vector<1x8x128xf32>
    tpu.vector_store %arg11[%c0_62, %c0_63, %c0_64], %102 {strides = array<i32>} : memref<2x8x128xf32, #tpu.memory_space<vmem>>, vector<1x8x128xf32>,
    %c0_65 = arith.constant 0 : index
    %c0_66 = arith.constant 0 : index
    %103 = vector.load %arg5[%c0_65, %c0_66] : memref<128x128xf32, #tpu.memory_space<vmem>>, vector<128x128xf32>
    %c0_67 = arith.constant 0 : index
    %c0_68 = arith.constant 0 : index
    %104 = vector.load %arg6[%c0_67, %c0_68] : memref<128x128xf32, #tpu.memory_space<vmem>>, vector<128x128xf32>
    %c0_69 = arith.constant 0 : index
    %c0_70 = arith.constant 0 : index
    %105 = vector.load %arg7[%c0_69, %c0_70] : memref<1x128xf32, #tpu.memory_space<vmem>>, vector<1x128xf32>
    %c0_71 = arith.constant 0 : index
    %c0_72 = arith.constant 0 : index
    %c0_73 = arith.constant 0 : index
    %106 = vector.load %arg12[%c0_71, %c0_72, %c0_73] : memref<8x8x128xf32, #tpu.memory_space<vmem>>, vector<8x8x128xf32>
    %107 = vector.shape_cast %106 : vector<8x8x128xf32> to vector<64x128xf32>
    %cst_74 = arith.constant dense<0.000000e+00> : vector<64x128xf32>
    %108 = tpu.matmul %107, %103, %cst_74 {dimension_numbers = #tpu.dot_dimension_numbers<[1], [0], [0], [1], [0, 0, 1, 1], [], []>} : vector<64x128xf32>, vector<128x128xf32>, vector<64x128xf32> -> vector<64x128xf32>
    %109 = vector.broadcast %105 : vector<1x128xf32> to vector<64x128xf32>
    %110 = arith.addf %108, %109 : vector<64x128xf32>
    %111 = vector.shape_cast %110 : vector<64x128xf32> to vector<8x8x128xf32>
    %c0_75 = arith.constant 0 : index
    %c0_76 = arith.constant 0 : index
    %c0_77 = arith.constant 0 : index
    %112 = vector.load %arg12[%c0_75, %c0_76, %c0_77] : memref<8x8x128xf32, #tpu.memory_space<vmem>>, vector<8x8x128xf32>
    tpu.vector_store %arg12[%c0_75, %c0_76, %c0_77], %111 {strides = array<i32>} : memref<8x8x128xf32, #tpu.memory_space<vmem>>, vector<8x8x128xf32>,
    %c1 = arith.constant 1 : index
    %c0_78 = arith.constant 0 : index
    %c0_79 = arith.constant 0 : index
    %113 = vector.load %arg1[%c1, %c0_78, %c0_79] : memref<2x8x128xf32, #tpu.memory_space<vmem>>, vector<1x8x128xf32>
    %114 = vector.shape_cast %113 : vector<1x8x128xf32> to vector<8x128xf32>
    %c0_i32_80 = arith.constant 0 : i32
    %115 = arith.index_cast %c0_i32_80 : i32 to index
    %c0_81 = arith.constant 0 : index
    %c0_82 = arith.constant 0 : index
    %116 = vector.load %arg12[%115, %c0_81, %c0_82] : memref<8x8x128xf32, #tpu.memory_space<vmem>>, vector<1x8x128xf32>
    %117 = vector.shape_cast %116 : vector<1x8x128xf32> to vector<8x128xf32>
    %cst_83 = arith.constant dense<0.000000e+00> : vector<8x128xf32>
    %118 = tpu.matmul %114, %104, %cst_83 {dimension_numbers = #tpu.dot_dimension_numbers<[1], [0], [0], [1], [0, 0, 1, 1], [], []>} : vector<8x128xf32>, vector<128x128xf32>, vector<8x128xf32> -> vector<8x128xf32>
    %119 = arith.addf %117, %118 : vector<8x128xf32>
    %cst_84 = arith.constant 0.000000e+00 : f32
    %120 = vector.broadcast %cst_84 : f32 to vector<8x128xf32>
    %121 = arith.maximumf %119, %120 : vector<8x128xf32>
    %122 = arith.index_cast %c0_i32_80 : i32 to index
    %c0_85 = arith.constant 0 : index
    %c0_86 = arith.constant 0 : index
    %123 = vector.load %arg12[%122, %c0_85, %c0_86] : memref<8x8x128xf32, #tpu.memory_space<vmem>>, vector<1x8x128xf32>
    %124 = vector.shape_cast %123 : vector<1x8x128xf32> to vector<8x128xf32>
    %125 = vector.shape_cast %121 : vector<8x128xf32> to vector<1x8x128xf32>
    tpu.vector_store %arg12[%122, %c0_85, %c0_86], %125 {strides = array<i32>} : memref<8x8x128xf32, #tpu.memory_space<vmem>>, vector<1x8x128xf32>,
    %c1_i32_87 = arith.constant 1 : i32
    %126 = arith.index_cast %c1_i32_87 : i32 to index
    %c0_88 = arith.constant 0 : index
    %c0_89 = arith.constant 0 : index
    %127 = vector.load %arg12[%126, %c0_88, %c0_89] : memref<8x8x128xf32, #tpu.memory_space<vmem>>, vector<1x8x128xf32>
    %128 = vector.shape_cast %127 : vector<1x8x128xf32> to vector<8x128xf32>
    %cst_90 = arith.constant dense<0.000000e+00> : vector<8x128xf32>
    %129 = tpu.matmul %121, %104, %cst_90 {dimension_numbers = #tpu.dot_dimension_numbers<[1], [0], [0], [1], [0, 0, 1, 1], [], []>} : vector<8x128xf32>, vector<128x128xf32>, vector<8x128xf32> -> vector<8x128xf32>
    %130 = arith.addf %128, %129 : vector<8x128xf32>
    %cst_91 = arith.constant 0.000000e+00 : f32
    %131 = vector.broadcast %cst_91 : f32 to vector<8x128xf32>
    %132 = arith.maximumf %130, %131 : vector<8x128xf32>
    %133 = arith.index_cast %c1_i32_87 : i32 to index
    %c0_92 = arith.constant 0 : index
    %c0_93 = arith.constant 0 : index
    %134 = vector.load %arg12[%133, %c0_92, %c0_93] : memref<8x8x128xf32, #tpu.memory_space<vmem>>, vector<1x8x128xf32>
    %135 = vector.shape_cast %134 : vector<1x8x128xf32> to vector<8x128xf32>
    %136 = vector.shape_cast %132 : vector<8x128xf32> to vector<1x8x128xf32>
    tpu.vector_store %arg12[%133, %c0_92, %c0_93], %136 {strides = array<i32>} : memref<8x8x128xf32, #tpu.memory_space<vmem>>, vector<1x8x128xf32>,
    %c2_i32_94 = arith.constant 2 : i32
    %137 = arith.index_cast %c2_i32_94 : i32 to index
    %c0_95 = arith.constant 0 : index
    %c0_96 = arith.constant 0 : index
    %138 = vector.load %arg12[%137, %c0_95, %c0_96] : memref<8x8x128xf32, #tpu.memory_space<vmem>>, vector<1x8x128xf32>
    %139 = vector.shape_cast %138 : vector<1x8x128xf32> to vector<8x128xf32>
    %cst_97 = arith.constant dense<0.000000e+00> : vector<8x128xf32>
    %140 = tpu.matmul %132, %104, %cst_97 {dimension_numbers = #tpu.dot_dimension_numbers<[1], [0], [0], [1], [0, 0, 1, 1], [], []>} : vector<8x128xf32>, vector<128x128xf32>, vector<8x128xf32> -> vector<8x128xf32>
    %141 = arith.addf %139, %140 : vector<8x128xf32>
    %cst_98 = arith.constant 0.000000e+00 : f32
    %142 = vector.broadcast %cst_98 : f32 to vector<8x128xf32>
    %143 = arith.maximumf %141, %142 : vector<8x128xf32>
    %144 = arith.index_cast %c2_i32_94 : i32 to index
    %c0_99 = arith.constant 0 : index
    %c0_100 = arith.constant 0 : index
    %145 = vector.load %arg12[%144, %c0_99, %c0_100] : memref<8x8x128xf32, #tpu.memory_space<vmem>>, vector<1x8x128xf32>
    %146 = vector.shape_cast %145 : vector<1x8x128xf32> to vector<8x128xf32>
    %147 = vector.shape_cast %143 : vector<8x128xf32> to vector<1x8x128xf32>
    tpu.vector_store %arg12[%144, %c0_99, %c0_100], %147 {strides = array<i32>} : memref<8x8x128xf32, #tpu.memory_space<vmem>>, vector<1x8x128xf32>,
    %c3_i32_101 = arith.constant 3 : i32
    %148 = arith.index_cast %c3_i32_101 : i32 to index
    %c0_102 = arith.constant 0 : index
    %c0_103 = arith.constant 0 : index
    %149 = vector.load %arg12[%148, %c0_102, %c0_103] : memref<8x8x128xf32, #tpu.memory_space<vmem>>, vector<1x8x128xf32>
    %150 = vector.shape_cast %149 : vector<1x8x128xf32> to vector<8x128xf32>
    %cst_104 = arith.constant dense<0.000000e+00> : vector<8x128xf32>
    %151 = tpu.matmul %143, %104, %cst_104 {dimension_numbers = #tpu.dot_dimension_numbers<[1], [0], [0], [1], [0, 0, 1, 1], [], []>} : vector<8x128xf32>, vector<128x128xf32>, vector<8x128xf32> -> vector<8x128xf32>
    %152 = arith.addf %150, %151 : vector<8x128xf32>
    %cst_105 = arith.constant 0.000000e+00 : f32
    %153 = vector.broadcast %cst_105 : f32 to vector<8x128xf32>
    %154 = arith.maximumf %152, %153 : vector<8x128xf32>
    %155 = arith.index_cast %c3_i32_101 : i32 to index
    %c0_106 = arith.constant 0 : index
    %c0_107 = arith.constant 0 : index
    %156 = vector.load %arg12[%155, %c0_106, %c0_107] : memref<8x8x128xf32, #tpu.memory_space<vmem>>, vector<1x8x128xf32>
    %157 = vector.shape_cast %156 : vector<1x8x128xf32> to vector<8x128xf32>
    %158 = vector.shape_cast %154 : vector<8x128xf32> to vector<1x8x128xf32>
    tpu.vector_store %arg12[%155, %c0_106, %c0_107], %158 {strides = array<i32>} : memref<8x8x128xf32, #tpu.memory_space<vmem>>, vector<1x8x128xf32>,
    %c4_i32_108 = arith.constant 4 : i32
    %159 = arith.index_cast %c4_i32_108 : i32 to index
    %c0_109 = arith.constant 0 : index
    %c0_110 = arith.constant 0 : index
    %160 = vector.load %arg12[%159, %c0_109, %c0_110] : memref<8x8x128xf32, #tpu.memory_space<vmem>>, vector<1x8x128xf32>
    %161 = vector.shape_cast %160 : vector<1x8x128xf32> to vector<8x128xf32>
    %cst_111 = arith.constant dense<0.000000e+00> : vector<8x128xf32>
    %162 = tpu.matmul %154, %104, %cst_111 {dimension_numbers = #tpu.dot_dimension_numbers<[1], [0], [0], [1], [0, 0, 1, 1], [], []>} : vector<8x128xf32>, vector<128x128xf32>, vector<8x128xf32> -> vector<8x128xf32>
    %163 = arith.addf %161, %162 : vector<8x128xf32>
    %cst_112 = arith.constant 0.000000e+00 : f32
    %164 = vector.broadcast %cst_112 : f32 to vector<8x128xf32>
    %165 = arith.maximumf %163, %164 : vector<8x128xf32>
    %166 = arith.index_cast %c4_i32_108 : i32 to index
    %c0_113 = arith.constant 0 : index
    %c0_114 = arith.constant 0 : index
    %167 = vector.load %arg12[%166, %c0_113, %c0_114] : memref<8x8x128xf32, #tpu.memory_space<vmem>>, vector<1x8x128xf32>
    %168 = vector.shape_cast %167 : vector<1x8x128xf32> to vector<8x128xf32>
    %169 = vector.shape_cast %165 : vector<8x128xf32> to vector<1x8x128xf32>
    tpu.vector_store %arg12[%166, %c0_113, %c0_114], %169 {strides = array<i32>} : memref<8x8x128xf32, #tpu.memory_space<vmem>>, vector<1x8x128xf32>,
    %c5_i32_115 = arith.constant 5 : i32
    %170 = arith.index_cast %c5_i32_115 : i32 to index
    %c0_116 = arith.constant 0 : index
    %c0_117 = arith.constant 0 : index
    %171 = vector.load %arg12[%170, %c0_116, %c0_117] : memref<8x8x128xf32, #tpu.memory_space<vmem>>, vector<1x8x128xf32>
    %172 = vector.shape_cast %171 : vector<1x8x128xf32> to vector<8x128xf32>
    %cst_118 = arith.constant dense<0.000000e+00> : vector<8x128xf32>
    %173 = tpu.matmul %165, %104, %cst_118 {dimension_numbers = #tpu.dot_dimension_numbers<[1], [0], [0], [1], [0, 0, 1, 1], [], []>} : vector<8x128xf32>, vector<128x128xf32>, vector<8x128xf32> -> vector<8x128xf32>
    %174 = arith.addf %172, %173 : vector<8x128xf32>
    %cst_119 = arith.constant 0.000000e+00 : f32
    %175 = vector.broadcast %cst_119 : f32 to vector<8x128xf32>
    %176 = arith.maximumf %174, %175 : vector<8x128xf32>
    %177 = arith.index_cast %c5_i32_115 : i32 to index
    %c0_120 = arith.constant 0 : index
    %c0_121 = arith.constant 0 : index
    %178 = vector.load %arg12[%177, %c0_120, %c0_121] : memref<8x8x128xf32, #tpu.memory_space<vmem>>, vector<1x8x128xf32>
    %179 = vector.shape_cast %178 : vector<1x8x128xf32> to vector<8x128xf32>
    %180 = vector.shape_cast %176 : vector<8x128xf32> to vector<1x8x128xf32>
    tpu.vector_store %arg12[%177, %c0_120, %c0_121], %180 {strides = array<i32>} : memref<8x8x128xf32, #tpu.memory_space<vmem>>, vector<1x8x128xf32>,
    %c6_i32_122 = arith.constant 6 : i32
    %181 = arith.index_cast %c6_i32_122 : i32 to index
    %c0_123 = arith.constant 0 : index
    %c0_124 = arith.constant 0 : index
    %182 = vector.load %arg12[%181, %c0_123, %c0_124] : memref<8x8x128xf32, #tpu.memory_space<vmem>>, vector<1x8x128xf32>
    %183 = vector.shape_cast %182 : vector<1x8x128xf32> to vector<8x128xf32>
    %cst_125 = arith.constant dense<0.000000e+00> : vector<8x128xf32>
    %184 = tpu.matmul %176, %104, %cst_125 {dimension_numbers = #tpu.dot_dimension_numbers<[1], [0], [0], [1], [0, 0, 1, 1], [], []>} : vector<8x128xf32>, vector<128x128xf32>, vector<8x128xf32> -> vector<8x128xf32>
    %185 = arith.addf %183, %184 : vector<8x128xf32>
    %cst_126 = arith.constant 0.000000e+00 : f32
    %186 = vector.broadcast %cst_126 : f32 to vector<8x128xf32>
    %187 = arith.maximumf %185, %186 : vector<8x128xf32>
    %188 = arith.index_cast %c6_i32_122 : i32 to index
    %c0_127 = arith.constant 0 : index
    %c0_128 = arith.constant 0 : index
    %189 = vector.load %arg12[%188, %c0_127, %c0_128] : memref<8x8x128xf32, #tpu.memory_space<vmem>>, vector<1x8x128xf32>
    %190 = vector.shape_cast %189 : vector<1x8x128xf32> to vector<8x128xf32>
    %191 = vector.shape_cast %187 : vector<8x128xf32> to vector<1x8x128xf32>
    tpu.vector_store %arg12[%188, %c0_127, %c0_128], %191 {strides = array<i32>} : memref<8x8x128xf32, #tpu.memory_space<vmem>>, vector<1x8x128xf32>,
    %c7_i32_129 = arith.constant 7 : i32
    %192 = arith.index_cast %c7_i32_129 : i32 to index
    %c0_130 = arith.constant 0 : index
    %c0_131 = arith.constant 0 : index
    %193 = vector.load %arg12[%192, %c0_130, %c0_131] : memref<8x8x128xf32, #tpu.memory_space<vmem>>, vector<1x8x128xf32>
    %194 = vector.shape_cast %193 : vector<1x8x128xf32> to vector<8x128xf32>
    %cst_132 = arith.constant dense<0.000000e+00> : vector<8x128xf32>
    %195 = tpu.matmul %187, %104, %cst_132 {dimension_numbers = #tpu.dot_dimension_numbers<[1], [0], [0], [1], [0, 0, 1, 1], [], []>} : vector<8x128xf32>, vector<128x128xf32>, vector<8x128xf32> -> vector<8x128xf32>
    %196 = arith.addf %194, %195 : vector<8x128xf32>
    %cst_133 = arith.constant 0.000000e+00 : f32
    %197 = vector.broadcast %cst_133 : f32 to vector<8x128xf32>
    %198 = arith.maximumf %196, %197 : vector<8x128xf32>
    %199 = arith.index_cast %c7_i32_129 : i32 to index
    %c0_134 = arith.constant 0 : index
    %c0_135 = arith.constant 0 : index
    %200 = vector.load %arg12[%199, %c0_134, %c0_135] : memref<8x8x128xf32, #tpu.memory_space<vmem>>, vector<1x8x128xf32>
    %201 = vector.shape_cast %200 : vector<1x8x128xf32> to vector<8x128xf32>
    %202 = vector.shape_cast %198 : vector<8x128xf32> to vector<1x8x128xf32>
    tpu.vector_store %arg12[%199, %c0_134, %c0_135], %202 {strides = array<i32>} : memref<8x8x128xf32, #tpu.memory_space<vmem>>, vector<1x8x128xf32>,
    %c8_i32_136 = arith.constant 8 : i32
    %c1_137 = arith.constant 1 : index
    %c0_138 = arith.constant 0 : index
    %c0_139 = arith.constant 0 : index
    %203 = vector.load %arg11[%c1_137, %c0_138, %c0_139] : memref<2x8x128xf32, #tpu.memory_space<vmem>>, vector<1x8x128xf32>
    %204 = vector.shape_cast %203 : vector<1x8x128xf32> to vector<8x128xf32>
    %205 = vector.shape_cast %198 : vector<8x128xf32> to vector<1x8x128xf32>
    tpu.vector_store %arg11[%c1_137, %c0_138, %c0_139], %205 {strides = array<i32>} : memref<2x8x128xf32, #tpu.memory_space<vmem>>, vector<1x8x128xf32>,
    %c0_140 = arith.constant 0 : index
    %c0_141 = arith.constant 0 : index
    %206 = vector.load %arg8[%c0_140, %c0_141] : memref<128x128xf32, #tpu.memory_space<vmem>>, vector<128x128xf32>
    %c0_142 = arith.constant 0 : index
    %c0_143 = arith.constant 0 : index
    %207 = vector.load %arg9[%c0_142, %c0_143] : memref<1x128xf32, #tpu.memory_space<vmem>>, vector<1x128xf32>
    %c0_144 = arith.constant 0 : index
    %c0_145 = arith.constant 0 : index
    %c0_146 = arith.constant 0 : index
    %208 = vector.load %arg12[%c0_144, %c0_145, %c0_146] : memref<8x8x128xf32, #tpu.memory_space<vmem>>, vector<8x8x128xf32>
    %209 = vector.shape_cast %208 : vector<8x8x128xf32> to vector<64x128xf32>
    %cst_147 = arith.constant dense<0.000000e+00> : vector<64x128xf32>
    %210 = tpu.matmul %209, %206, %cst_147 {dimension_numbers = #tpu.dot_dimension_numbers<[1], [0], [0], [1], [0, 0, 1, 1], [], []>} : vector<64x128xf32>, vector<128x128xf32>, vector<64x128xf32> -> vector<64x128xf32>
    %211 = vector.broadcast %207 : vector<1x128xf32> to vector<64x128xf32>
    %212 = arith.addf %210, %211 : vector<64x128xf32>
    %213 = math.tanh %212 : vector<64x128xf32>
    %214 = vector.shape_cast %213 : vector<64x128xf32> to vector<8x8x128xf32>
    %c0_148 = arith.constant 0 : index
    %c0_149 = arith.constant 0 : index
    %c0_150 = arith.constant 0 : index
    %215 = vector.load %arg10[%c0_148, %c0_149, %c0_150] : memref<8x8x128xf32, #tpu.memory_space<vmem>>, vector<8x8x128xf32>
    tpu.vector_store %arg10[%c0_148, %c0_149, %c0_150], %214 {strides = array<i32>} : memref<8x8x128xf32, #tpu.memory_space<vmem>>, vector<8x8x128xf32>,
    return
  }
}

</mosaic_0001>

<llo_original>
// kernel: tpu_custom_call.1
$region0: #{tpu_custom_call.1}
  #allocation0 [shape = 'u32[]', space=smem, size = 0x4, offset = 0x4, fixed_abs, tag = 'smem constant byte address 0x4 - core index']
  #allocation1 [shape = 'u32[144,128]{1,0:T(1,128)}', space=vmem, size = 0x12000, scoped, tag = 'internal scratch']
  #allocation2 [shape = 'f32[8,8,128]{2,1,0:T(8,128)}', space=vmem, size = 0x8000, scoped, tag = 'scratch operand']
  %s0 = inlined_call_operand.hbm [shape: f32[8,8,128], index: 0, kind: input, shape index: {}]
  %s1 = inlined_call_operand.hbm [shape: f32[2,8,128], index: 1, kind: input, shape index: {}]
  %s2 = inlined_call_operand.hbm [shape: f32[128,128], index: 2, kind: input, shape index: {}]
  %s3 = inlined_call_operand.hbm [shape: f32[128,128], index: 3, kind: input, shape index: {}]
  %s4 = inlined_call_operand.vmem [shape: f32[1,128], index: 4, kind: input, shape index: {}]
  %s5 = inlined_call_operand.hbm [shape: f32[128,128], index: 5, kind: input, shape index: {}]
  %s6 = inlined_call_operand.hbm [shape: f32[128,128], index: 6, kind: input, shape index: {}]
  %s7 = inlined_call_operand.vmem [shape: f32[1,128], index: 7, kind: input, shape index: {}]
  %s8 = inlined_call_operand.hbm [shape: f32[128,128], index: 8, kind: input, shape index: {}]
  %s9 = inlined_call_operand.vmem [shape: f32[1,128], index: 9, kind: input, shape index: {}]
  %s10 = inlined_call_operand.hbm [shape: f32[8,8,128], index: 10, kind: output, shape index: {0}]
  %s11 = inlined_call_operand.hbm [shape: f32[2,8,128], index: 11, kind: output, shape index: {1}]
  %12 = xla_tuple %s10, %s11
  %s13 = sld [smem:[#allocation0]]
  $region86: #{tpu_custom_call.1} parent=0
    _
  %s15 = ssub.s32 1, %s13
  %s16 = scalar_select 0, %s15, %s13
  $region1: #{tpu_custom_call.1} parent=0
    #allocation3 [shape = 'u8[32768]{0}', space=vmem, size = 0x8000, scoped, tag = 'input window, operand 0, single buffered']
    #allocation4 [shape = 's32[1]{0}', space=sflag, size = 0x4, scoped, tag = 'scoped memory for tpu_custom_call.1']
    #allocation5 [shape = 's32[1]{0}', space=sflag, size = 0x4, scoped, tag = 'scoped memory for tpu_custom_call.1']
    #allocation6 [shape = 'u8[8192]{0}', space=vmem, size = 0x2000, scoped, tag = 'input window, operand 1, single buffered']
    #allocation7 [shape = 's32[1]{0}', space=sflag, size = 0x4, scoped, tag = 'scoped memory for tpu_custom_call.1']
    #allocation8 [shape = 'u8[65536]{0}', space=vmem, size = 0x10000, scoped, tag = 'input window, operand 2, single buffered']
    #allocation9 [shape = 'u8[65536]{0}', space=vmem, size = 0x10000, scoped, tag = 'input window, operand 3, single buffered']
    #allocation10 [shape = 's32[1]{0}', space=sflag, size = 0x4, scoped, tag = 'scoped memory for tpu_custom_call.1']
    #allocation11 [shape = 'u8[65536]{0}', space=vmem, size = 0x10000, scoped, tag = 'input window, operand 5, single buffered']
    #allocation12 [shape = 'u8[65536]{0}', space=vmem, size = 0x10000, scoped, tag = 'input window, operand 6, single buffered']
    #allocation13 [shape = 's32[1]{0}', space=sflag, size = 0x4, scoped, tag = 'scoped memory for tpu_custom_call.1']
    #allocation14 [shape = 'u8[65536]{0}', space=vmem, size = 0x10000, scoped, tag = 'input window, operand 8, single buffered']
    #allocation15 [shape = 'u8[32768]{0}', space=vmem, size = 0x8000, scoped, tag = 'output window, operand 0, single buffered']
    #allocation16 [shape = 'u8[8192]{0}', space=vmem, size = 0x2000, scoped, tag = 'output window, operand 1, single buffered']
    #allocation17 [shape = 's32[1]{0}', space=sflag, size = 0x4, scoped, tag = 'scoped memory for tpu_custom_call.1']
    %17 = vsyncpa [#allocation4], 0
    %18 = vsyncpa [#allocation7], 0
    %19 = vsyncpa [#allocation10], 0
    %20 = vsyncpa [#allocation13], 0
    %21 = vsyncpa [#allocation5], 0
    %22 = vsyncpa [#allocation17], 0
    // Predicated region
    $region2: #{tpu_custom_call.1} parent=1 // pred_check
      _
    $region3: #{tpu_custom_call.1} parent=1 // pred_check_branch
      %24 = sbr.rel (0) target = $region5
    $region4: #{tpu_custom_call.1} parent=1 // pred_region
      %s26 = ssub.s32 1024, 1024
      %27 = vsyncadd [#allocation4], %s26
      %s28 = sshll.u32 [#allocation3], 4
      %s29 = int_to_ptr.vmem [resolvable:$true] %s28
      %34 = dma.hbm_to_vmem [thread:$0]  %s0, 1024, %s29, [#allocation4], 128, 128, 8
    $region5: #{tpu_custom_call.1} parent=1 // pred_fallthru
      _
    // Predicated region
    $region6: #{tpu_custom_call.1} parent=1 // pred_check
      _
    $region7: #{tpu_custom_call.1} parent=1 // pred_check_branch
      %36 = sbr.rel (0) target = $region9
    $region8: #{tpu_custom_call.1} parent=1 // pred_region
      %s38 = ssub.s32 256, 256
      %39 = vsyncadd [#allocation7], %s38
      %s40 = sshll.u32 [#allocation6], 4
      %s41 = int_to_ptr.vmem [resolvable:$true] %s40
      %46 = dma.hbm_to_vmem [thread:$0]  %s1, 256, %s41, [#allocation7], 128, 128, 8
    $region9: #{tpu_custom_call.1} parent=1 // pred_fallthru
      _
    // Predicated region
    $region10: #{tpu_custom_call.1} parent=1 // pred_check
      _
    $region11: #{tpu_custom_call.1} parent=1 // pred_check_branch
      %48 = sbr.rel (0) target = $region13
    $region12: #{tpu_custom_call.1} parent=1 // pred_region
      %s50 = ssub.s32 2048, 2048
      %51 = vsyncadd [#allocation7], %s50
      %s52 = sshll.u32 [#allocation8], 4
      %s53 = int_to_ptr.vmem [resolvable:$true] %s52
      %58 = dma.hbm_to_vmem [thread:$0]  %s2, 2048, %s53, [#allocation7], 128, 128, 8
    $region13: #{tpu_custom_call.1} parent=1 // pred_fallthru
      _
    // Predicated region
    $region14: #{tpu_custom_call.1} parent=1 // pred_check
      _
    $region15: #{tpu_custom_call.1} parent=1 // pred_check_branch
      %60 = sbr.rel (0) target = $region17
    $region16: #{tpu_custom_call.1} parent=1 // pred_region
      %s62 = ssub.s32 2048, 2048
      %63 = vsyncadd [#allocation10], %s62
      %s64 = sshll.u32 [#allocation9], 4
      %s65 = int_to_ptr.vmem [resolvable:$true] %s64
      %70 = dma.hbm_to_vmem [thread:$0]  %s3, 2048, %s65, [#allocation10], 128, 128, 8
    $region17: #{tpu_custom_call.1} parent=1 // pred_fallthru
      _
    // Predicated region
    $region18: #{tpu_custom_call.1} parent=1 // pred_check
      _
    $region19: #{tpu_custom_call.1} parent=1 // pred_check_branch
      %72 = sbr.rel (0) target = $region21
    $region20: #{tpu_custom_call.1} parent=1 // pred_region
      _
    $region21: #{tpu_custom_call.1} parent=1 // pred_fallthru
      _
    // Predicated region
    $region22: #{tpu_custom_call.1} parent=1 // pred_check
      _
    $region23: #{tpu_custom_call.1} parent=1 // pred_check_branch
      %74 = sbr.rel (0) target = $region25
    $region24: #{tpu_custom_call.1} parent=1 // pred_region
      %s76 = ssub.s32 2048, 2048
      %77 = vsyncadd [#allocation10], %s76
      %s78 = sshll.u32 [#allocation11], 4
      %s79 = int_to_ptr.vmem [resolvable:$true] %s78
      %84 = dma.hbm_to_vmem [thread:$0]  %s5, 2048, %s79, [#allocation10], 128, 128, 8
    $region25: #{tpu_custom_call.1} parent=1 // pred_fallthru
      _
    // Predicated region
    $region26: #{tpu_custom_call.1} parent=1 // pred_check
      _
    $region27: #{tpu_custom_call.1} parent=1 // pred_check_branch
      %86 = sbr.rel (0) target = $region29
    $region28: #{tpu_custom_call.1} parent=1 // pred_region
      %s88 = ssub.s32 2048, 2048
      %89 = vsyncadd [#allocation13], %s88
      %s90 = sshll.u32 [#allocation12], 4
      %s91 = int_to_ptr.vmem [resolvable:$true] %s90
      %96 = dma.hbm_to_vmem [thread:$0]  %s6, 2048, %s91, [#allocation13], 128, 128, 8
    $region29: #{tpu_custom_call.1} parent=1 // pred_fallthru
      _
    // Predicated region
    $region30: #{tpu_custom_call.1} parent=1 // pred_check
      _
    $region31: #{tpu_custom_call.1} parent=1 // pred_check_branch
      %98 = sbr.rel (0) target = $region33
    $region32: #{tpu_custom_call.1} parent=1 // pred_region
      _
    $region33: #{tpu_custom_call.1} parent=1 // pred_fallthru
      _
    // Predicated region
    $region34: #{tpu_custom_call.1} parent=1 // pred_check
      _
    $region35: #{tpu_custom_call.1} parent=1 // pred_check_branch
      %100 = sbr.rel (0) target = $region37
    $region36: #{tpu_custom_call.1} parent=1 // pred_region
      %s102 = ssub.s32 2048, 2048
      %103 = vsyncadd [#allocation13], %s102
      %s104 = sshll.u32 [#allocation14], 4
      %s105 = int_to_ptr.vmem [resolvable:$true] %s104
      %110 = dma.hbm_to_vmem [thread:$0]  %s8, 2048, %s105, [#allocation13], 128, 128, 8
    $region37: #{tpu_custom_call.1} parent=1 // pred_fallthru
      _
    // Predicated region
    $region38: #{tpu_custom_call.1} parent=1 // pred_check
      _
    $region39: #{tpu_custom_call.1} parent=1 // pred_check_branch
      %112 = sbr.rel (0) target = $region41
    $region40: #{tpu_custom_call.1} parent=1 // pred_region
      _
    $region41: #{tpu_custom_call.1} parent=1 // pred_fallthru
      _
    // Predicated region
    $region42: #{tpu_custom_call.1} parent=1 // pred_check
      _
    $region43: #{tpu_custom_call.1} parent=1 // pred_check_branch
      %114 = sbr.rel (0) target = $region45
    $region44: #{tpu_custom_call.1} parent=1 // pred_region
      %115 = dma.done [#allocation4], 1024
    $region45: #{tpu_custom_call.1} parent=1 // pred_fallthru
      _
    // Predicated region
    $region46: #{tpu_custom_call.1} parent=1 // pred_check
      _
    $region47: #{tpu_custom_call.1} parent=1 // pred_check_branch
      %117 = sbr.rel (0) target = $region49
    $region48: #{tpu_custom_call.1} parent=1 // pred_region
      %118 = dma.done [#allocation7], 256
    $region49: #{tpu_custom_call.1} parent=1 // pred_fallthru
      _
    // Predicated region
    $region50: #{tpu_custom_call.1} parent=1 // pred_check
      _
    $region51: #{tpu_custom_call.1} parent=1 // pred_check_branch
      %120 = sbr.rel (0) target = $region53
    $region52: #{tpu_custom_call.1} parent=1 // pred_region
      %121 = dma.done [#allocation7], 2048
    $region53: #{tpu_custom_call.1} parent=1 // pred_fallthru
      _
    // Predicated region
    $region54: #{tpu_custom_call.1} parent=1 // pred_check
      _
    $region55: #{tpu_custom_call.1} parent=1 // pred_check_branch
      %123 = sbr.rel (0) target = $region57
    $region56: #{tpu_custom_call.1} parent=1 // pred_region
      %124 = dma.done [#allocation10], 2048
    $region57: #{tpu_custom_call.1} parent=1 // pred_fallthru
      _
    // Predicated region
    $region58: #{tpu_custom_call.1} parent=1 // pred_check
      _
    $region59: #{tpu_custom_call.1} parent=1 // pred_check_branch
      %126 = sbr.rel (0) target = $region61
    $region60: #{tpu_custom_call.1} parent=1 // pred_region
      %127 = dma.done [#allocation10], 2048
    $region61: #{tpu_custom_call.1} parent=1 // pred_fallthru
      _
    // Predicated region
    $region62: #{tpu_custom_call.1} parent=1 // pred_check
      _
    $region63: #{tpu_custom_call.1} parent=1 // pred_check_branch
      %129 = sbr.rel (0) target = $region65
    $region64: #{tpu_custom_call.1} parent=1 // pred_region
      %130 = dma.done [#allocation13], 2048
    $region65: #{tpu_custom_call.1} parent=1 // pred_fallthru
      _
    // Predicated region
    $region66: #{tpu_custom_call.1} parent=1 // pred_check
      _
    $region67: #{tpu_custom_call.1} parent=1 // pred_check_branch
      %132 = sbr.rel (0) target = $region69
    $region68: #{tpu_custom_call.1} parent=1 // pred_region
      %133 = dma.done [#allocation13], 2048
    $region69: #{tpu_custom_call.1} parent=1 // pred_fallthru
      _
    %v134 = vld [vmem:[#allocation8] sm:$0xff]
    %v135 = vld [vmem:[#allocation8 + $0x8] sm:$0xff]
    %v136 = vld [vmem:[#allocation8 + $0x10] sm:$0xff]
    %v137 = vld [vmem:[#allocation8 + $0x18] sm:$0xff]
    %v138 = vld [vmem:[#allocation8 + $0x20] sm:$0xff]
    %v139 = vld [vmem:[#allocation8 + $0x28] sm:$0xff]
    %v140 = vld [vmem:[#allocation8 + $0x30] sm:$0xff]
    %v141 = vld [vmem:[#allocation8 + $0x38] sm:$0xff]
    %v142 = vld [vmem:[#allocation8 + $0x40] sm:$0xff]
    %v143 = vld [vmem:[#allocation8 + $0x48] sm:$0xff]
    %v144 = vld [vmem:[#allocation8 + $0x50] sm:$0xff]
    %v145 = vld [vmem:[#allocation8 + $0x58] sm:$0xff]
    %v146 = vld [vmem:[#allocation8 + $0x60] sm:$0xff]
    %v147 = vld [vmem:[#allocation8 + $0x68] sm:$0xff]
    %v148 = vld [vmem:[#allocation8 + $0x70] sm:$0xff]
    %v149 = vld [vmem:[#allocation8 + $0x78] sm:$0xff]
    %v150 = vld [vmem:[#allocation9] sm:$0xff]
    %v151 = vld [vmem:[#allocation9 + $0x8] sm:$0xff]
    %v152 = vld [vmem:[#allocation9 + $0x10] sm:$0xff]
    %v153 = vld [vmem:[#allocation9 + $0x18] sm:$0xff]
    %v154 = vld [vmem:[#allocation9 + $0x20] sm:$0xff]
    %v155 = vld [vmem:[#allocation9 + $0x28] sm:$0xff]
    %v156 = vld [vmem:[#allocation9 + $0x30] sm:$0xff]
    %v157 = vld [vmem:[#allocation9 + $0x38] sm:$0xff]
    %v158 = vld [vmem:[#allocation9 + $0x40] sm:$0xff]
    %v159 = vld [vmem:[#allocation9 + $0x48] sm:$0xff]
    %v160 = vld [vmem:[#allocation9 + $0x50] sm:$0xff]
    %v161 = vld [vmem:[#allocation9 + $0x58] sm:$0xff]
    %v162 = vld [vmem:[#allocation9 + $0x60] sm:$0xff]
    %v163 = vld [vmem:[#allocation9 + $0x68] sm:$0xff]
    %v164 = vld [vmem:[#allocation9 + $0x70] sm:$0xff]
    %v165 = vld [vmem:[#allocation9 + $0x78] sm:$0xff]
    %v166 = vld [vmem:[%s4] sm:$0x1]
    %v167 = vld [vmem:[#allocation3] sm:$0xff]
    %v168 = vld [vmem:[#allocation3 + $0x8] sm:$0xff]
    %v169 = vld [vmem:[#allocation3 + $0x10] sm:$0xff]
    %v170 = vld [vmem:[#allocation3 + $0x18] sm:$0xff]
    %v171 = vld [vmem:[#allocation3 + $0x20] sm:$0xff]
    %v172 = vld [vmem:[#allocation3 + $0x28] sm:$0xff]
    %v173 = vld [vmem:[#allocation3 + $0x30] sm:$0xff]
    %v174 = vld [vmem:[#allocation3 + $0x38] sm:$0xff]
    %v176 = vlaneseq
    %v177 = vshrl.u32 %v176, 7
    %v178 = vsub.s32 0, %v177
    %v179 = vrot.slane %v166, %v178
    %181 = vmatprep.subr.mxu0 0.0
    %182 = vmatpush1.msra.mxu0 %v134
    %183 = vmatprep.subr.mxu0 0.0
    %184 = vmatpush1.msra.mxu0 %v135
    %185 = vmatprep.subr.mxu0 0.0
    %186 = vmatpush1.msra.mxu0 %v136
    %187 = vmatprep.subr.mxu0 0.0
    %188 = vmatpush1.msra.mxu0 %v137
    %189 = vmatprep.subr.mxu0 0.0
    %190 = vmatpush1.msra.mxu0 %v138
    %191 = vmatprep.subr.mxu0 0.0
    %192 = vmatpush1.msra.mxu0 %v139
    %193 = vmatprep.subr.mxu0 0.0
    %194 = vmatpush1.msra.mxu0 %v140
    %195 = vmatprep.subr.mxu0 0.0
    %196 = vmatpush1.msra.mxu0 %v141
    %197 = vmatprep.subr.mxu0 0.0
    %198 = vmatpush1.msra.mxu0 %v142
    %199 = vmatprep.subr.mxu0 0.0
    %200 = vmatpush1.msra.mxu0 %v143
    %201 = vmatprep.subr.mxu0 0.0
    %202 = vmatpush1.msra.mxu0 %v144
    %203 = vmatprep.subr.mxu0 0.0
    %204 = vmatpush1.msra.mxu0 %v145
    %205 = vmatprep.subr.mxu0 0.0
    %206 = vmatpush1.msra.mxu0 %v146
    %207 = vmatprep.subr.mxu0 0.0
    %208 = vmatpush1.msra.mxu0 %v147
    %209 = vmatprep.subr.mxu0 0.0
    %210 = vmatpush1.msra.mxu0 %v148
    %211 = vmatprep.subr.mxu0 0.0
    %212 = vmatpush1.msra.mxu0 %v149
    %213 = vmatprep.subr.mxu0 0.0
    %214 = vmatpush1.msra.mxu0 0.0
    %215 = vmatprep.subr.mxu0 0.0
    %216 = vmatpush1.msra.mxu0 0.0
    %217 = vmatprep.subr.mxu0 0.0
    %218 = vmatpush1.msra.mxu0 0.0
    %219 = vmatprep.subr.mxu0 0.0
    %220 = vmatpush1.msra.mxu0 0.0
    %221 = vmatprep.subr.mxu0 0.0
    %222 = vmatpush1.msra.mxu0 0.0
    %223 = vmatprep.subr.mxu0 0.0
    %224 = vmatpush1.msra.mxu0 0.0
    %225 = vmatprep.subr.mxu0 0.0
    %226 = vmatpush1.msra.mxu0 0.0
    %227 = vmatprep.subr.mxu0 0.0
    %228 = vmatpush1.msra.mxu0 0.0
    %229 = vmatprep.subr.mxu0 0.0
    %230 = vmatpush1.msra.mxu0 0.0
    %231 = vmatprep.subr.mxu0 0.0
    %232 = vmatpush1.msra.mxu0 0.0
    %233 = vmatprep.subr.mxu0 0.0
    %234 = vmatpush1.msra.mxu0 0.0
    %235 = vmatprep.subr.mxu0 0.0
    %236 = vmatpush1.msra.mxu0 0.0
    %237 = vmatprep.subr.mxu0 0.0
    %238 = vmatpush1.msra.mxu0 0.0
    %239 = vmatprep.subr.mxu0 0.0
    %240 = vmatpush1.msra.mxu0 0.0
    %241 = vmatprep.subr.mxu0 0.0
    %242 = vmatpush1.msra.mxu0 0.0
    %243 = vmatprep.subr.mxu0 0.0
    %244 = vmatpush1.msra.mxu0 0.0
    %245 = vmatprep.mubr.f32.mxu0 0.0
    %246 = vmatmul.mubr.f32.gmra.mrb[0].mxu0 %v167
    %v247 = vpop.f32.mrb[0].mxu0
    %v248 = vadd.f32 %v179, %v247
    %v249 = vpop.f32.mrb[0].mxu0
    %250 = vmatprep.mubr.f32.mxu0 0.0
    %251 = vmatmul.mubr.f32.gmra.mrb[0].mxu0 %v168
    %v252 = vpop.f32.mrb[0].mxu0
    %v253 = vadd.f32 %v179, %v252
    %v254 = vpop.f32.mrb[0].mxu0
    %255 = vmatprep.mubr.f32.mxu0 0.0
    %256 = vmatmul.mubr.f32.gmra.mrb[0].mxu0 %v169
    %v257 = vpop.f32.mrb[0].mxu0
    %v258 = vadd.f32 %v179, %v257
    %v259 = vpop.f32.mrb[0].mxu0
    %260 = vmatprep.mubr.f32.mxu0 0.0
    %261 = vmatmul.mubr.f32.gmra.mrb[0].mxu0 %v170
    %v262 = vpop.f32.mrb[0].mxu0
    %v263 = vadd.f32 %v179, %v262
    %v264 = vpop.f32.mrb[0].mxu0
    %265 = vmatprep.mubr.f32.mxu0 0.0
    %266 = vmatmul.mubr.f32.gmra.mrb[0].mxu0 %v171
    %v267 = vpop.f32.mrb[0].mxu0
    %v268 = vadd.f32 %v179, %v267
    %v269 = vpop.f32.mrb[0].mxu0
    %270 = vmatprep.mubr.f32.mxu0 0.0
    %271 = vmatmul.mubr.f32.gmra.mrb[0].mxu0 %v172
    %v272 = vpop.f32.mrb[0].mxu0
    %v273 = vadd.f32 %v179, %v272
    %v274 = vpop.f32.mrb[0].mxu0
    %275 = vmatprep.mubr.f32.mxu0 0.0
    %276 = vmatmul.mubr.f32.gmra.mrb[0].mxu0 %v173
    %v277 = vpop.f32.mrb[0].mxu0
    %v278 = vadd.f32 %v179, %v277
    %v279 = vpop.f32.mrb[0].mxu0
    %280 = vmatprep.mubr.f32.mxu0 0.0
    %281 = vmatmul.mubr.f32.gmra.mrb[0].mxu0 %v174
    %v282 = vpop.f32.mrb[0].mxu0
    %v283 = vadd.f32 %v179, %v282
    %v284 = vpop.f32.mrb[0].mxu0
    %285 = vdwg.mxu0
    %286 = vst [vmem:[#allocation2] sm:$0xff] %v248
    %287 = vst [vmem:[#allocation2 + $0x8] sm:$0xff] %v253
    %288 = vst [vmem:[#allocation2 + $0x10] sm:$0xff] %v258
    %289 = vst [vmem:[#allocation2 + $0x18] sm:$0xff] %v263
    %290 = vst [vmem:[#allocation2 + $0x20] sm:$0xff] %v268
    %291 = vst [vmem:[#allocation2 + $0x28] sm:$0xff] %v273
    %292 = vst [vmem:[#allocation2 + $0x30] sm:$0xff] %v278
    %293 = vst [vmem:[#allocation2 + $0x38] sm:$0xff] %v283
    %v294 = vld [vmem:[#allocation6] sm:$0xff]
    %v295 = vld [vmem:[#allocation2] sm:$0xff]
    %296 = vmatprep.subr.mxu0 0.0
    %297 = vmatpush1.msra.mxu0 %v150
    %298 = vmatprep.subr.mxu0 0.0
    %299 = vmatpush1.msra.mxu0 %v151
    %300 = vmatprep.subr.mxu0 0.0
    %301 = vmatpush1.msra.mxu0 %v152
    %302 = vmatprep.subr.mxu0 0.0
    %303 = vmatpush1.msra.mxu0 %v153
    %304 = vmatprep.subr.mxu0 0.0
    %305 = vmatpush1.msra.mxu0 %v154
    %306 = vmatprep.subr.mxu0 0.0
    %307 = vmatpush1.msra.mxu0 %v155
    %308 = vmatprep.subr.mxu0 0.0
    %309 = vmatpush1.msra.mxu0 %v156
    %310 = vmatprep.subr.mxu0 0.0
    %311 = vmatpush1.msra.mxu0 %v157
    %312 = vmatprep.subr.mxu0 0.0
    %313 = vmatpush1.msra.mxu0 %v158
    %314 = vmatprep.subr.mxu0 0.0
    %315 = vmatpush1.msra.mxu0 %v159
    %316 = vmatprep.subr.mxu0 0.0
    %317 = vmatpush1.msra.mxu0 %v160
    %318 = vmatprep.subr.mxu0 0.0
    %319 = vmatpush1.msra.mxu0 %v161
    %320 = vmatprep.subr.mxu0 0.0
    %321 = vmatpush1.msra.mxu0 %v162
    %322 = vmatprep.subr.mxu0 0.0
    %323 = vmatpush1.msra.mxu0 %v163
    %324 = vmatprep.subr.mxu0 0.0
    %325 = vmatpush1.msra.mxu0 %v164
    %326 = vmatprep.subr.mxu0 0.0
    %327 = vmatpush1.msra.mxu0 %v165
    %328 = vmatprep.subr.mxu0 0.0
    %329 = vmatpush1.msra.mxu0 0.0
    %330 = vmatprep.subr.mxu0 0.0
    %331 = vmatpush1.msra.mxu0 0.0
    %332 = vmatprep.subr.mxu0 0.0
    %333 = vmatpush1.msra.mxu0 0.0
    %334 = vmatprep.subr.mxu0 0.0
    %335 = vmatpush1.msra.mxu0 0.0
    %336 = vmatprep.subr.mxu0 0.0
    %337 = vmatpush1.msra.mxu0 0.0
    %338 = vmatprep.subr.mxu0 0.0
    %339 = vmatpush1.msra.mxu0 0.0
    %340 = vmatprep.subr.mxu0 0.0
    %341 = vmatpush1.msra.mxu0 0.0
    %342 = vmatprep.subr.mxu0 0.0
    %343 = vmatpush1.msra.mxu0 0.0
    %344 = vmatprep.subr.mxu0 0.0
    %345 = vmatpush1.msra.mxu0 0.0
    %346 = vmatprep.subr.mxu0 0.0
    %347 = vmatpush1.msra.mxu0 0.0
    %348 = vmatprep.subr.mxu0 0.0
    %349 = vmatpush1.msra.mxu0 0.0
    %350 = vmatprep.subr.mxu0 0.0
    %351 = vmatpush1.msra.mxu0 0.0
    %352 = vmatprep.subr.mxu0 0.0
    %353 = vmatpush1.msra.mxu0 0.0
    %354 = vmatprep.subr.mxu0 0.0
    %355 = vmatpush1.msra.mxu0 0.0
    %356 = vmatprep.subr.mxu0 0.0
    %357 = vmatpush1.msra.mxu0 0.0
    %358 = vmatprep.subr.mxu0 0.0
    %359 = vmatpush1.msra.mxu0 0.0
    %360 = vmatprep.mubr.f32.mxu0 0.0
    %361 = vmatmul.mubr.f32.gmra.mrb[0].mxu0 %v294
    %v362 = vpop.f32.mrb[0].mxu0
    %v363 = vadd.f32 0.0, %v362
    %v364 = vpop.f32.mrb[0].mxu0
    %365 = vdwg.mxu0
    %v366 = vadd.f32 %v295, %v363
    %v367 = vmax.f32 %v366, 0.0
    %368 = vst [vmem:[#allocation2] sm:$0xff] %v367
    %s369 = scalar_lea.vmem [#allocation2], 8
    %v370 = vld [vmem:[%s369] sm:$0xff]
    %371 = vmatprep.subr.mxu0 0.0
    %372 = vmatpush1.msra.mxu0 %v150
    %373 = vmatprep.subr.mxu0 0.0
    %374 = vmatpush1.msra.mxu0 %v151
    %375 = vmatprep.subr.mxu0 0.0
    %376 = vmatpush1.msra.mxu0 %v152
    %377 = vmatprep.subr.mxu0 0.0
    %378 = vmatpush1.msra.mxu0 %v153
    %379 = vmatprep.subr.mxu0 0.0
    %380 = vmatpush1.msra.mxu0 %v154
    %381 = vmatprep.subr.mxu0 0.0
    %382 = vmatpush1.msra.mxu0 %v155
    %383 = vmatprep.subr.mxu0 0.0
    %384 = vmatpush1.msra.mxu0 %v156
    %385 = vmatprep.subr.mxu0 0.0
    %386 = vmatpush1.msra.mxu0 %v157
    %387 = vmatprep.subr.mxu0 0.0
    %388 = vmatpush1.msra.mxu0 %v158
    %389 = vmatprep.subr.mxu0 0.0
    %390 = vmatpush1.msra.mxu0 %v159
    %391 = vmatprep.subr.mxu0 0.0
    %392 = vmatpush1.msra.mxu0 %v160
    %393 = vmatprep.subr.mxu0 0.0
    %394 = vmatpush1.msra.mxu0 %v161
    %395 = vmatprep.subr.mxu0 0.0
    %396 = vmatpush1.msra.mxu0 %v162
    %397 = vmatprep.subr.mxu0 0.0
    %398 = vmatpush1.msra.mxu0 %v163
    %399 = vmatprep.subr.mxu0 0.0
    %400 = vmatpush1.msra.mxu0 %v164
    %401 = vmatprep.subr.mxu0 0.0
    %402 = vmatpush1.msra.mxu0 %v165
    %403 = vmatprep.subr.mxu0 0.0
    %404 = vmatpush1.msra.mxu0 0.0
    %405 = vmatprep.subr.mxu0 0.0
    %406 = vmatpush1.msra.mxu0 0.0
    %407 = vmatprep.subr.mxu0 0.0
    %408 = vmatpush1.msra.mxu0 0.0
    %409 = vmatprep.subr.mxu0 0.0
    %410 = vmatpush1.msra.mxu0 0.0
    %411 = vmatprep.subr.mxu0 0.0
    %412 = vmatpush1.msra.mxu0 0.0
    %413 = vmatprep.subr.mxu0 0.0
    %414 = vmatpush1.msra.mxu0 0.0
    %415 = vmatprep.subr.mxu0 0.0
    %416 = vmatpush1.msra.mxu0 0.0
    %417 = vmatprep.subr.mxu0 0.0
    %418 = vmatpush1.msra.mxu0 0.0
    %419 = vmatprep.subr.mxu0 0.0
    %420 = vmatpush1.msra.mxu0 0.0
    %421 = vmatprep.subr.mxu0 0.0
    %422 = vmatpush1.msra.mxu0 0.0
    %423 = vmatprep.subr.mxu0 0.0
    %424 = vmatpush1.msra.mxu0 0.0
    %425 = vmatprep.subr.mxu0 0.0
    %426 = vmatpush1.msra.mxu0 0.0
    %427 = vmatprep.subr.mxu0 0.0
    %428 = vmatpush1.msra.mxu0 0.0
    %429 = vmatprep.subr.mxu0 0.0
    %430 = vmatpush1.msra.mxu0 0.0
    %431 = vmatprep.subr.mxu0 0.0
    %432 = vmatpush1.msra.mxu0 0.0
    %433 = vmatprep.subr.mxu0 0.0
    %434 = vmatpush1.msra.mxu0 0.0
    %435 = vmatprep.mubr.f32.mxu0 0.0
    %436 = vmatmul.mubr.f32.gmra.mrb[0].mxu0 %v367
    %v437 = vpop.f32.mrb[0].mxu0
    %v438 = vadd.f32 0.0, %v437
    %v439 = vpop.f32.mrb[0].mxu0
    %440 = vdwg.mxu0
    %v441 = vadd.f32 %v370, %v438
    %v442 = vmax.f32 %v441, 0.0
    %443 = vst [vmem:[%s369] sm:$0xff] %v442
    %s444 = scalar_lea.vmem [#allocation2], 16
    %v445 = vld [vmem:[%s444] sm:$0xff]
    %446 = vmatprep.subr.mxu0 0.0
    %447 = vmatpush1.msra.mxu0 %v150
    %448 = vmatprep.subr.mxu0 0.0
    %449 = vmatpush1.msra.mxu0 %v151
    %450 = vmatprep.subr.mxu0 0.0
    %451 = vmatpush1.msra.mxu0 %v152
    %452 = vmatprep.subr.mxu0 0.0
    %453 = vmatpush1.msra.mxu0 %v153
    %454 = vmatprep.subr.mxu0 0.0
    %455 = vmatpush1.msra.mxu0 %v154
    %456 = vmatprep.subr.mxu0 0.0
    %457 = vmatpush1.msra.mxu0 %v155
    %458 = vmatprep.subr.mxu0 0.0
    %459 = vmatpush1.msra.mxu0 %v156
    %460 = vmatprep.subr.mxu0 0.0
    %461 = vmatpush1.msra.mxu0 %v157
    %462 = vmatprep.subr.mxu0 0.0
    %463 = vmatpush1.msra.mxu0 %v158
    %464 = vmatprep.subr.mxu0 0.0
    %465 = vmatpush1.msra.mxu0 %v159
    %466 = vmatprep.subr.mxu0 0.0
    %467 = vmatpush1.msra.mxu0 %v160
    %468 = vmatprep.subr.mxu0 0.0
    %469 = vmatpush1.msra.mxu0 %v161
    %470 = vmatprep.subr.mxu0 0.0
    %471 = vmatpush1.msra.mxu0 %v162
    %472 = vmatprep.subr.mxu0 0.0
    %473 = vmatpush1.msra.mxu0 %v163
    %474 = vmatprep.subr.mxu0 0.0
    %475 = vmatpush1.msra.mxu0 %v164
    %476 = vmatprep.subr.mxu0 0.0
    %477 = vmatpush1.msra.mxu0 %v165
    %478 = vmatprep.subr.mxu0 0.0
    %479 = vmatpush1.msra.mxu0 0.0
    %480 = vmatprep.subr.mxu0 0.0
    %481 = vmatpush1.msra.mxu0 0.0
    %482 = vmatprep.subr.mxu0 0.0
    %483 = vmatpush1.msra.mxu0 0.0
    %484 = vmatprep.subr.mxu0 0.0
    %485 = vmatpush1.msra.mxu0 0.0
    %486 = vmatprep.subr.mxu0 0.0
    %487 = vmatpush1.msra.mxu0 0.0
    %488 = vmatprep.subr.mxu0 0.0
    %489 = vmatpush1.msra.mxu0 0.0
    %490 = vmatprep.subr.mxu0 0.0
    %491 = vmatpush1.msra.mxu0 0.0
    %492 = vmatprep.subr.mxu0 0.0
    %493 = vmatpush1.msra.mxu0 0.0
    %494 = vmatprep.subr.mxu0 0.0
    %495 = vmatpush1.msra.mxu0 0.0
    %496 = vmatprep.subr.mxu0 0.0
    %497 = vmatpush1.msra.mxu0 0.0
    %498 = vmatprep.subr.mxu0 0.0
    %499 = vmatpush1.msra.mxu0 0.0
    %500 = vmatprep.subr.mxu0 0.0
    %501 = vmatpush1.msra.mxu0 0.0
    %502 = vmatprep.subr.mxu0 0.0
    %503 = vmatpush1.msra.mxu0 0.0
    %504 = vmatprep.subr.mxu0 0.0
    %505 = vmatpush1.msra.mxu0 0.0
    %506 = vmatprep.subr.mxu0 0.0
    %507 = vmatpush1.msra.mxu0 0.0
    %508 = vmatprep.subr.mxu0 0.0
    %509 = vmatpush1.msra.mxu0 0.0
    %510 = vmatprep.mubr.f32.mxu0 0.0
    %511 = vmatmul.mubr.f32.gmra.mrb[0].mxu0 %v442
    %v512 = vpop.f32.mrb[0].mxu0
    %v513 = vadd.f32 0.0, %v512
    %v514 = vpop.f32.mrb[0].mxu0
    %515 = vdwg.mxu0
    %v516 = vadd.f32 %v445, %v513
    %v517 = vmax.f32 %v516, 0.0
    %518 = vst [vmem:[%s444] sm:$0xff] %v517
    %s519 = scalar_lea.vmem [#allocation2], 24
    %v520 = vld [vmem:[%s519] sm:$0xff]
    %521 = vmatprep.subr.mxu0 0.0
    %522 = vmatpush1.msra.mxu0 %v150
    %523 = vmatprep.subr.mxu0 0.0
    %524 = vmatpush1.msra.mxu0 %v151
    %525 = vmatprep.subr.mxu0 0.0
    %526 = vmatpush1.msra.mxu0 %v152
    %527 = vmatprep.subr.mxu0 0.0
    %528 = vmatpush1.msra.mxu0 %v153
    %529 = vmatprep.subr.mxu0 0.0
    %530 = vmatpush1.msra.mxu0 %v154
    %531 = vmatprep.subr.mxu0 0.0
    %532 = vmatpush1.msra.mxu0 %v155
    %533 = vmatprep.subr.mxu0 0.0
    %534 = vmatpush1.msra.mxu0 %v156
    %535 = vmatprep.subr.mxu0 0.0
    %536 = vmatpush1.msra.mxu0 %v157
    %537 = vmatprep.subr.mxu0 0.0
    %538 = vmatpush1.msra.mxu0 %v158
    %539 = vmatprep.subr.mxu0 0.0
    %540 = vmatpush1.msra.mxu0 %v159
    %541 = vmatprep.subr.mxu0 0.0
    %542 = vmatpush1.msra.mxu0 %v160
    %543 = vmatprep.subr.mxu0 0.0
    %544 = vmatpush1.msra.mxu0 %v161
    %545 = vmatprep.subr.mxu0 0.0
    %546 = vmatpush1.msra.mxu0 %v162
    %547 = vmatprep.subr.mxu0 0.0
    %548 = vmatpush1.msra.mxu0 %v163
    %549 = vmatprep.subr.mxu0 0.0
    %550 = vmatpush1.msra.mxu0 %v164
    %551 = vmatprep.subr.mxu0 0.0
    %552 = vmatpush1.msra.mxu0 %v165
    %553 = vmatprep.subr.mxu0 0.0
    %554 = vmatpush1.msra.mxu0 0.0
    %555 = vmatprep.subr.mxu0 0.0
    %556 = vmatpush1.msra.mxu0 0.0
    %557 = vmatprep.subr.mxu0 0.0
    %558 = vmatpush1.msra.mxu0 0.0
    %559 = vmatprep.subr.mxu0 0.0
    %560 = vmatpush1.msra.mxu0 0.0
    %561 = vmatprep.subr.mxu0 0.0
    %562 = vmatpush1.msra.mxu0 0.0
    %563 = vmatprep.subr.mxu0 0.0
    %564 = vmatpush1.msra.mxu0 0.0
    %565 = vmatprep.subr.mxu0 0.0
    %566 = vmatpush1.msra.mxu0 0.0
    %567 = vmatprep.subr.mxu0 0.0
    %568 = vmatpush1.msra.mxu0 0.0
    %569 = vmatprep.subr.mxu0 0.0
    %570 = vmatpush1.msra.mxu0 0.0
    %571 = vmatprep.subr.mxu0 0.0
    %572 = vmatpush1.msra.mxu0 0.0
    %573 = vmatprep.subr.mxu0 0.0
    %574 = vmatpush1.msra.mxu0 0.0
    %575 = vmatprep.subr.mxu0 0.0
    %576 = vmatpush1.msra.mxu0 0.0
    %577 = vmatprep.subr.mxu0 0.0
    %578 = vmatpush1.msra.mxu0 0.0
    %579 = vmatprep.subr.mxu0 0.0
    %580 = vmatpush1.msra.mxu0 0.0
    %581 = vmatprep.subr.mxu0 0.0
    %582 = vmatpush1.msra.mxu0 0.0
    %583 = vmatprep.subr.mxu0 0.0
    %584 = vmatpush1.msra.mxu0 0.0
    %585 = vmatprep.mubr.f32.mxu0 0.0
    %586 = vmatmul.mubr.f32.gmra.mrb[0].mxu0 %v517
    %v587 = vpop.f32.mrb[0].mxu0
    %v588 = vadd.f32 0.0, %v587
    %v589 = vpop.f32.mrb[0].mxu0
    %590 = vdwg.mxu0
    %v591 = vadd.f32 %v520, %v588
    %v592 = vmax.f32 %v591, 0.0
    %593 = vst [vmem:[%s519] sm:$0xff] %v592
    %s594 = scalar_lea.vmem [#allocation2], 32
    %v595 = vld [vmem:[%s594] sm:$0xff]
    %596 = vmatprep.subr.mxu0 0.0
    %597 = vmatpush1.msra.mxu0 %v150
    %598 = vmatprep.subr.mxu0 0.0
    %599 = vmatpush1.msra.mxu0 %v151
    %600 = vmatprep.subr.mxu0 0.0
    %601 = vmatpush1.msra.mxu0 %v152
    %602 = vmatprep.subr.mxu0 0.0
    %603 = vmatpush1.msra.mxu0 %v153
    %604 = vmatprep.subr.mxu0 0.0
    %605 = vmatpush1.msra.mxu0 %v154
    %606 = vmatprep.subr.mxu0 0.0
    %607 = vmatpush1.msra.mxu0 %v155
    %608 = vmatprep.subr.mxu0 0.0
    %609 = vmatpush1.msra.mxu0 %v156
    %610 = vmatprep.subr.mxu0 0.0
    %611 = vmatpush1.msra.mxu0 %v157
    %612 = vmatprep.subr.mxu0 0.0
    %613 = vmatpush1.msra.mxu0 %v158
    %614 = vmatprep.subr.mxu0 0.0
    %615 = vmatpush1.msra.mxu0 %v159
    %616 = vmatprep.subr.mxu0 0.0
    %617 = vmatpush1.msra.mxu0 %v160
    %618 = vmatprep.subr.mxu0 0.0
    %619 = vmatpush1.msra.mxu0 %v161
    %620 = vmatprep.subr.mxu0 0.0
    %621 = vmatpush1.msra.mxu0 %v162
    %622 = vmatprep.subr.mxu0 0.0
    %623 = vmatpush1.msra.mxu0 %v163
    %624 = vmatprep.subr.mxu0 0.0
    %625 = vmatpush1.msra.mxu0 %v164
    %626 = vmatprep.subr.mxu0 0.0
    %627 = vmatpush1.msra.mxu0 %v165
    %628 = vmatprep.subr.mxu0 0.0
    %629 = vmatpush1.msra.mxu0 0.0
    %630 = vmatprep.subr.mxu0 0.0
    %631 = vmatpush1.msra.mxu0 0.0
    %632 = vmatprep.subr.mxu0 0.0
    %633 = vmatpush1.msra.mxu0 0.0
    %634 = vmatprep.subr.mxu0 0.0
    %635 = vmatpush1.msra.mxu0 0.0
    %636 = vmatprep.subr.mxu0 0.0
    %637 = vmatpush1.msra.mxu0 0.0
    %638 = vmatprep.subr.mxu0 0.0
    %639 = vmatpush1.msra.mxu0 0.0
    %640 = vmatprep.subr.mxu0 0.0
    %641 = vmatpush1.msra.mxu0 0.0
    %642 = vmatprep.subr.mxu0 0.0
    %643 = vmatpush1.msra.mxu0 0.0
    %644 = vmatprep.subr.mxu0 0.0
    %645 = vmatpush1.msra.mxu0 0.0
    %646 = vmatprep.subr.mxu0 0.0
    %647 = vmatpush1.msra.mxu0 0.0
    %648 = vmatprep.subr.mxu0 0.0
    %649 = vmatpush1.msra.mxu0 0.0
    %650 = vmatprep.subr.mxu0 0.0
    %651 = vmatpush1.msra.mxu0 0.0
    %652 = vmatprep.subr.mxu0 0.0
    %653 = vmatpush1.msra.mxu0 0.0
    %654 = vmatprep.subr.mxu0 0.0
    %655 = vmatpush1.msra.mxu0 0.0
    %656 = vmatprep.subr.mxu0 0.0
    %657 = vmatpush1.msra.mxu0 0.0
    %658 = vmatprep.subr.mxu0 0.0
    %659 = vmatpush1.msra.mxu0 0.0
    %660 = vmatprep.mubr.f32.mxu0 0.0
    %661 = vmatmul.mubr.f32.gmra.mrb[0].mxu0 %v592
    %v662 = vpop.f32.mrb[0].mxu0
    %v663 = vadd.f32 0.0, %v662
    %v664 = vpop.f32.mrb[0].mxu0
    %665 = vdwg.mxu0
    %v666 = vadd.f32 %v595, %v663
    %v667 = vmax.f32 %v666, 0.0
    %668 = vst [vmem:[%s594] sm:$0xff] %v667
    %s669 = scalar_lea.vmem [#allocation2], 40
    %v670 = vld [vmem:[%s669] sm:$0xff]
    %671 = vmatprep.subr.mxu0 0.0
    %672 = vmatpush1.msra.mxu0 %v150
    %673 = vmatprep.subr.mxu0 0.0
    %674 = vmatpush1.msra.mxu0 %v151
    %675 = vmatprep.subr.mxu0 0.0
    %676 = vmatpush1.msra.mxu0 %v152
    %677 = vmatprep.subr.mxu0 0.0
    %678 = vmatpush1.msra.mxu0 %v153
    %679 = vmatprep.subr.mxu0 0.0
    %680 = vmatpush1.msra.mxu0 %v154
    %681 = vmatprep.subr.mxu0 0.0
    %682 = vmatpush1.msra.mxu0 %v155
    %683 = vmatprep.subr.mxu0 0.0
    %684 = vmatpush1.msra.mxu0 %v156
    %685 = vmatprep.subr.mxu0 0.0
    %686 = vmatpush1.msra.mxu0 %v157
    %687 = vmatprep.subr.mxu0 0.0
    %688 = vmatpush1.msra.mxu0 %v158
    %689 = vmatprep.subr.mxu0 0.0
    %690 = vmatpush1.msra.mxu0 %v159
    %691 = vmatprep.subr.mxu0 0.0
    %692 = vmatpush1.msra.mxu0 %v160
    %693 = vmatprep.subr.mxu0 0.0
    %694 = vmatpush1.msra.mxu0 %v161
    %695 = vmatprep.subr.mxu0 0.0
    %696 = vmatpush1.msra.mxu0 %v162
    %697 = vmatprep.subr.mxu0 0.0
    %698 = vmatpush1.msra.mxu0 %v163
    %699 = vmatprep.subr.mxu0 0.0
    %700 = vmatpush1.msra.mxu0 %v164
    %701 = vmatprep.subr.mxu0 0.0
    %702 = vmatpush1.msra.mxu0 %v165
    %703 = vmatprep.subr.mxu0 0.0
    %704 = vmatpush1.msra.mxu0 0.0
    %705 = vmatprep.subr.mxu0 0.0
    %706 = vmatpush1.msra.mxu0 0.0
    %707 = vmatprep.subr.mxu0 0.0
    %708 = vmatpush1.msra.mxu0 0.0
    %709 = vmatprep.subr.mxu0 0.0
    %710 = vmatpush1.msra.mxu0 0.0
    %711 = vmatprep.subr.mxu0 0.0
    %712 = vmatpush1.msra.mxu0 0.0
    %713 = vmatprep.subr.mxu0 0.0
    %714 = vmatpush1.msra.mxu0 0.0
    %715 = vmatprep.subr.mxu0 0.0
    %716 = vmatpush1.msra.mxu0 0.0
    %717 = vmatprep.subr.mxu0 0.0
    %718 = vmatpush1.msra.mxu0 0.0
    %719 = vmatprep.subr.mxu0 0.0
    %720 = vmatpush1.msra.mxu0 0.0
    %721 = vmatprep.subr.mxu0 0.0
    %722 = vmatpush1.msra.mxu0 0.0
    %723 = vmatprep.subr.mxu0 0.0
    %724 = vmatpush1.msra.mxu0 0.0
    %725 = vmatprep.subr.mxu0 0.0
    %726 = vmatpush1.msra.mxu0 0.0
    %727 = vmatprep.subr.mxu0 0.0
    %728 = vmatpush1.msra.mxu0 0.0
    %729 = vmatprep.subr.mxu0 0.0
    %730 = vmatpush1.msra.mxu0 0.0
    %731 = vmatprep.subr.mxu0 0.0
    %732 = vmatpush1.msra.mxu0 0.0
    %733 = vmatprep.subr.mxu0 0.0
    %734 = vmatpush1.msra.mxu0 0.0
    %735 = vmatprep.mubr.f32.mxu0 0.0
    %736 = vmatmul.mubr.f32.gmra.mrb[0].mxu0 %v667
    %v737 = vpop.f32.mrb[0].mxu0
    %v738 = vadd.f32 0.0, %v737
    %v739 = vpop.f32.mrb[0].mxu0
    %740 = vdwg.mxu0
    %v741 = vadd.f32 %v670, %v738
    %v742 = vmax.f32 %v741, 0.0
    %743 = vst [vmem:[%s669] sm:$0xff] %v742
    %s744 = scalar_lea.vmem [#allocation2], 48
    %v745 = vld [vmem:[%s744] sm:$0xff]
    %746 = vmatprep.subr.mxu0 0.0
    %747 = vmatpush1.msra.mxu0 %v150
    %748 = vmatprep.subr.mxu0 0.0
    %749 = vmatpush1.msra.mxu0 %v151
    %750 = vmatprep.subr.mxu0 0.0
    %751 = vmatpush1.msra.mxu0 %v152
    %752 = vmatprep.subr.mxu0 0.0
    %753 = vmatpush1.msra.mxu0 %v153
    %754 = vmatprep.subr.mxu0 0.0
    %755 = vmatpush1.msra.mxu0 %v154
    %756 = vmatprep.subr.mxu0 0.0
    %757 = vmatpush1.msra.mxu0 %v155
    %758 = vmatprep.subr.mxu0 0.0
    %759 = vmatpush1.msra.mxu0 %v156
    %760 = vmatprep.subr.mxu0 0.0
    %761 = vmatpush1.msra.mxu0 %v157
    %762 = vmatprep.subr.mxu0 0.0
    %763 = vmatpush1.msra.mxu0 %v158
    %764 = vmatprep.subr.mxu0 0.0
    %765 = vmatpush1.msra.mxu0 %v159
    %766 = vmatprep.subr.mxu0 0.0
    %767 = vmatpush1.msra.mxu0 %v160
    %768 = vmatprep.subr.mxu0 0.0
    %769 = vmatpush1.msra.mxu0 %v161
    %770 = vmatprep.subr.mxu0 0.0
    %771 = vmatpush1.msra.mxu0 %v162
    %772 = vmatprep.subr.mxu0 0.0
    %773 = vmatpush1.msra.mxu0 %v163
    %774 = vmatprep.subr.mxu0 0.0
    %775 = vmatpush1.msra.mxu0 %v164
    %776 = vmatprep.subr.mxu0 0.0
    %777 = vmatpush1.msra.mxu0 %v165
    %778 = vmatprep.subr.mxu0 0.0
    %779 = vmatpush1.msra.mxu0 0.0
    %780 = vmatprep.subr.mxu0 0.0
    %781 = vmatpush1.msra.mxu0 0.0
    %782 = vmatprep.subr.mxu0 0.0
    %783 = vmatpush1.msra.mxu0 0.0
    %784 = vmatprep.subr.mxu0 0.0
    %785 = vmatpush1.msra.mxu0 0.0
    %786 = vmatprep.subr.mxu0 0.0
    %787 = vmatpush1.msra.mxu0 0.0
    %788 = vmatprep.subr.mxu0 0.0
    %789 = vmatpush1.msra.mxu0 0.0
    %790 = vmatprep.subr.mxu0 0.0
    %791 = vmatpush1.msra.mxu0 0.0
    %792 = vmatprep.subr.mxu0 0.0
    %793 = vmatpush1.msra.mxu0 0.0
    %794 = vmatprep.subr.mxu0 0.0
    %795 = vmatpush1.msra.mxu0 0.0
    %796 = vmatprep.subr.mxu0 0.0
    %797 = vmatpush1.msra.mxu0 0.0
    %798 = vmatprep.subr.mxu0 0.0
    %799 = vmatpush1.msra.mxu0 0.0
    %800 = vmatprep.subr.mxu0 0.0
    %801 = vmatpush1.msra.mxu0 0.0
    %802 = vmatprep.subr.mxu0 0.0
    %803 = vmatpush1.msra.mxu0 0.0
    %804 = vmatprep.subr.mxu0 0.0
    %805 = vmatpush1.msra.mxu0 0.0
    %806 = vmatprep.subr.mxu0 0.0
    %807 = vmatpush1.msra.mxu0 0.0
    %808 = vmatprep.subr.mxu0 0.0
    %809 = vmatpush1.msra.mxu0 0.0
    %810 = vmatprep.mubr.f32.mxu0 0.0
    %811 = vmatmul.mubr.f32.gmra.mrb[0].mxu0 %v742
    %v812 = vpop.f32.mrb[0].mxu0
    %v813 = vadd.f32 0.0, %v812
    %v814 = vpop.f32.mrb[0].mxu0
    %815 = vdwg.mxu0
    %v816 = vadd.f32 %v745, %v813
    %v817 = vmax.f32 %v816, 0.0
    %818 = vst [vmem:[%s744] sm:$0xff] %v817
    %s819 = scalar_lea.vmem [#allocation2], 56
    %v820 = vld [vmem:[%s819] sm:$0xff]
    %821 = vmatprep.subr.mxu0 0.0
    %822 = vmatpush1.msra.mxu0 %v150
    %823 = vmatprep.subr.mxu0 0.0
    %824 = vmatpush1.msra.mxu0 %v151
    %825 = vmatprep.subr.mxu0 0.0
    %826 = vmatpush1.msra.mxu0 %v152
    %827 = vmatprep.subr.mxu0 0.0
    %828 = vmatpush1.msra.mxu0 %v153
    %829 = vmatprep.subr.mxu0 0.0
    %830 = vmatpush1.msra.mxu0 %v154
    %831 = vmatprep.subr.mxu0 0.0
    %832 = vmatpush1.msra.mxu0 %v155
    %833 = vmatprep.subr.mxu0 0.0
    %834 = vmatpush1.msra.mxu0 %v156
    %835 = vmatprep.subr.mxu0 0.0
    %836 = vmatpush1.msra.mxu0 %v157
    %837 = vmatprep.subr.mxu0 0.0
    %838 = vmatpush1.msra.mxu0 %v158
    %839 = vmatprep.subr.mxu0 0.0
    %840 = vmatpush1.msra.mxu0 %v159
    %841 = vmatprep.subr.mxu0 0.0
    %842 = vmatpush1.msra.mxu0 %v160
    %843 = vmatprep.subr.mxu0 0.0
    %844 = vmatpush1.msra.mxu0 %v161
    %845 = vmatprep.subr.mxu0 0.0
    %846 = vmatpush1.msra.mxu0 %v162
    %847 = vmatprep.subr.mxu0 0.0
    %848 = vmatpush1.msra.mxu0 %v163
    %849 = vmatprep.subr.mxu0 0.0
    %850 = vmatpush1.msra.mxu0 %v164
    %851 = vmatprep.subr.mxu0 0.0
    %852 = vmatpush1.msra.mxu0 %v165
    %853 = vmatprep.subr.mxu0 0.0
    %854 = vmatpush1.msra.mxu0 0.0
    %855 = vmatprep.subr.mxu0 0.0
    %856 = vmatpush1.msra.mxu0 0.0
    %857 = vmatprep.subr.mxu0 0.0
    %858 = vmatpush1.msra.mxu0 0.0
    %859 = vmatprep.subr.mxu0 0.0
    %860 = vmatpush1.msra.mxu0 0.0
    %861 = vmatprep.subr.mxu0 0.0
    %862 = vmatpush1.msra.mxu0 0.0
    %863 = vmatprep.subr.mxu0 0.0
    %864 = vmatpush1.msra.mxu0 0.0
    %865 = vmatprep.subr.mxu0 0.0
    %866 = vmatpush1.msra.mxu0 0.0
    %867 = vmatprep.subr.mxu0 0.0
    %868 = vmatpush1.msra.mxu0 0.0
    %869 = vmatprep.subr.mxu0 0.0
    %870 = vmatpush1.msra.mxu0 0.0
    %871 = vmatprep.subr.mxu0 0.0
    %872 = vmatpush1.msra.mxu0 0.0
    %873 = vmatprep.subr.mxu0 0.0
    %874 = vmatpush1.msra.mxu0 0.0
    %875 = vmatprep.subr.mxu0 0.0
    %876 = vmatpush1.msra.mxu0 0.0
    %877 = vmatprep.subr.mxu0 0.0
    %878 = vmatpush1.msra.mxu0 0.0
    %879 = vmatprep.subr.mxu0 0.0
    %880 = vmatpush1.msra.mxu0 0.0
    %881 = vmatprep.subr.mxu0 0.0
    %882 = vmatpush1.msra.mxu0 0.0
    %883 = vmatprep.subr.mxu0 0.0
    %884 = vmatpush1.msra.mxu0 0.0
    %885 = vmatprep.mubr.f32.mxu0 0.0
    %886 = vmatmul.mubr.f32.gmra.mrb[0].mxu0 %v817
    %v887 = vpop.f32.mrb[0].mxu0
    %v888 = vadd.f32 0.0, %v887
    %v889 = vpop.f32.mrb[0].mxu0
    %890 = vdwg.mxu0
    %v891 = vadd.f32 %v820, %v888
    %v892 = vmax.f32 %v891, 0.0
    %893 = vst [vmem:[%s819] sm:$0xff] %v892
    %894 = vst [vmem:[#allocation16] sm:$0xff] %v892
    %v895 = vld [vmem:[#allocation11] sm:$0xff]
    %v896 = vld [vmem:[#allocation11 + $0x8] sm:$0xff]
    %v897 = vld [vmem:[#allocation11 + $0x10] sm:$0xff]
    %v898 = vld [vmem:[#allocation11 + $0x18] sm:$0xff]
    %v899 = vld [vmem:[#allocation11 + $0x20] sm:$0xff]
    %v900 = vld [vmem:[#allocation11 + $0x28] sm:$0xff]
    %v901 = vld [vmem:[#allocation11 + $0x30] sm:$0xff]
    %v902 = vld [vmem:[#allocation11 + $0x38] sm:$0xff]
    %v903 = vld [vmem:[#allocation11 + $0x40] sm:$0xff]
    %v904 = vld [vmem:[#allocation11 + $0x48] sm:$0xff]
    %v905 = vld [vmem:[#allocation11 + $0x50] sm:$0xff]
    %v906 = vld [vmem:[#allocation11 + $0x58] sm:$0xff]
    %v907 = vld [vmem:[#allocation11 + $0x60] sm:$0xff]
    %v908 = vld [vmem:[#allocation11 + $0x68] sm:$0xff]
    %v909 = vld [vmem:[#allocation11 + $0x70] sm:$0xff]
    %v910 = vld [vmem:[#allocation11 + $0x78] sm:$0xff]
    %v911 = vld [vmem:[#allocation12] sm:$0xff]
    %v912 = vld [vmem:[#allocation12 + $0x8] sm:$0xff]
    %v913 = vld [vmem:[#allocation12 + $0x10] sm:$0xff]
    %v914 = vld [vmem:[#allocation12 + $0x18] sm:$0xff]
    %v915 = vld [vmem:[#allocation12 + $0x20] sm:$0xff]
    %v916 = vld [vmem:[#allocation12 + $0x28] sm:$0xff]
    %v917 = vld [vmem:[#allocation12 + $0x30] sm:$0xff]
    %v918 = vld [vmem:[#allocation12 + $0x38] sm:$0xff]
    %v919 = vld [vmem:[#allocation12 + $0x40] sm:$0xff]
    %v920 = vld [vmem:[#allocation12 + $0x48] sm:$0xff]
    %v921 = vld [vmem:[#allocation12 + $0x50] sm:$0xff]
    %v922 = vld [vmem:[#allocation12 + $0x58] sm:$0xff]
    %v923 = vld [vmem:[#allocation12 + $0x60] sm:$0xff]
    %v924 = vld [vmem:[#allocation12 + $0x68] sm:$0xff]
    %v925 = vld [vmem:[#allocation12 + $0x70] sm:$0xff]
    %v926 = vld [vmem:[#allocation12 + $0x78] sm:$0xff]
    %v927 = vld [vmem:[%s7] sm:$0x1]
    %v928 = vld [vmem:[#allocation2] sm:$0xff]
    %v929 = vld [vmem:[#allocation2 + $0x8] sm:$0xff]
    %v930 = vld [vmem:[#allocation2 + $0x10] sm:$0xff]
    %v931 = vld [vmem:[#allocation2 + $0x18] sm:$0xff]
    %v932 = vld [vmem:[#allocation2 + $0x20] sm:$0xff]
    %v933 = vld [vmem:[#allocation2 + $0x28] sm:$0xff]
    %v934 = vld [vmem:[#allocation2 + $0x30] sm:$0xff]
    %v935 = vld [vmem:[#allocation2 + $0x38] sm:$0xff]
    %v937 = vlaneseq
    %v938 = vshrl.u32 %v937, 7
    %v939 = vsub.s32 0, %v938
    %v940 = vrot.slane %v927, %v939
    %942 = vmatprep.subr.mxu0 0.0
    %943 = vmatpush1.msra.mxu0 %v895
    %944 = vmatprep.subr.mxu0 0.0
    %945 = vmatpush1.msra.mxu0 %v896
    %946 = vmatprep.subr.mxu0 0.0
    %947 = vmatpush1.msra.mxu0 %v897
    %948 = vmatprep.subr.mxu0 0.0
    %949 = vmatpush1.msra.mxu0 %v898
    %950 = vmatprep.subr.mxu0 0.0
    %951 = vmatpush1.msra.mxu0 %v899
    %952 = vmatprep.subr.mxu0 0.0
    %953 = vmatpush1.msra.mxu0 %v900
    %954 = vmatprep.subr.mxu0 0.0
    %955 = vmatpush1.msra.mxu0 %v901
    %956 = vmatprep.subr.mxu0 0.0
    %957 = vmatpush1.msra.mxu0 %v902
    %958 = vmatprep.subr.mxu0 0.0
    %959 = vmatpush1.msra.mxu0 %v903
    %960 = vmatprep.subr.mxu0 0.0
    %961 = vmatpush1.msra.mxu0 %v904
    %962 = vmatprep.subr.mxu0 0.0
    %963 = vmatpush1.msra.mxu0 %v905
    %964 = vmatprep.subr.mxu0 0.0
    %965 = vmatpush1.msra.mxu0 %v906
    %966 = vmatprep.subr.mxu0 0.0
    %967 = vmatpush1.msra.mxu0 %v907
    %968 = vmatprep.subr.mxu0 0.0
    %969 = vmatpush1.msra.mxu0 %v908
    %970 = vmatprep.subr.mxu0 0.0
    %971 = vmatpush1.msra.mxu0 %v909
    %972 = vmatprep.subr.mxu0 0.0
    %973 = vmatpush1.msra.mxu0 %v910
    %974 = vmatprep.subr.mxu0 0.0
    %975 = vmatpush1.msra.mxu0 0.0
    %976 = vmatprep.subr.mxu0 0.0
    %977 = vmatpush1.msra.mxu0 0.0
    %978 = vmatprep.subr.mxu0 0.0
    %979 = vmatpush1.msra.mxu0 0.0
    %980 = vmatprep.subr.mxu0 0.0
    %981 = vmatpush1.msra.mxu0 0.0
    %982 = vmatprep.subr.mxu0 0.0
    %983 = vmatpush1.msra.mxu0 0.0
    %984 = vmatprep.subr.mxu0 0.0
    %985 = vmatpush1.msra.mxu0 0.0
    %986 = vmatprep.subr.mxu0 0.0
    %987 = vmatpush1.msra.mxu0 0.0
    %988 = vmatprep.subr.mxu0 0.0
    %989 = vmatpush1.msra.mxu0 0.0
    %990 = vmatprep.subr.mxu0 0.0
    %991 = vmatpush1.msra.mxu0 0.0
    %992 = vmatprep.subr.mxu0 0.0
    %993 = vmatpush1.msra.mxu0 0.0
    %994 = vmatprep.subr.mxu0 0.0
    %995 = vmatpush1.msra.mxu0 0.0
    %996 = vmatprep.subr.mxu0 0.0
    %997 = vmatpush1.msra.mxu0 0.0
    %998 = vmatprep.subr.mxu0 0.0
    %999 = vmatpush1.msra.mxu0 0.0
    %1000 = vmatprep.subr.mxu0 0.0
    %1001 = vmatpush1.msra.mxu0 0.0
    %1002 = vmatprep.subr.mxu0 0.0
    %1003 = vmatpush1.msra.mxu0 0.0
    %1004 = vmatprep.subr.mxu0 0.0
    %1005 = vmatpush1.msra.mxu0 0.0
    %1006 = vmatprep.mubr.f32.mxu0 0.0
    %1007 = vmatmul.mubr.f32.gmra.mrb[0].mxu0 %v928
    %v1008 = vpop.f32.mrb[0].mxu0
    %v1009 = vadd.f32 %v940, %v1008
    %v1010 = vpop.f32.mrb[0].mxu0
    %1011 = vmatprep.mubr.f32.mxu0 0.0
    %1012 = vmatmul.mubr.f32.gmra.mrb[0].mxu0 %v929
    %v1013 = vpop.f32.mrb[0].mxu0
    %v1014 = vadd.f32 %v940, %v1013
    %v1015 = vpop.f32.mrb[0].mxu0
    %1016 = vmatprep.mubr.f32.mxu0 0.0
    %1017 = vmatmul.mubr.f32.gmra.mrb[0].mxu0 %v930
    %v1018 = vpop.f32.mrb[0].mxu0
    %v1019 = vadd.f32 %v940, %v1018
    %v1020 = vpop.f32.mrb[0].mxu0
    %1021 = vmatprep.mubr.f32.mxu0 0.0
    %1022 = vmatmul.mubr.f32.gmra.mrb[0].mxu0 %v931
    %v1023 = vpop.f32.mrb[0].mxu0
    %v1024 = vadd.f32 %v940, %v1023
    %v1025 = vpop.f32.mrb[0].mxu0
    %1026 = vmatprep.mubr.f32.mxu0 0.0
    %1027 = vmatmul.mubr.f32.gmra.mrb[0].mxu0 %v932
    %v1028 = vpop.f32.mrb[0].mxu0
    %v1029 = vadd.f32 %v940, %v1028
    %v1030 = vpop.f32.mrb[0].mxu0
    %1031 = vmatprep.mubr.f32.mxu0 0.0
    %1032 = vmatmul.mubr.f32.gmra.mrb[0].mxu0 %v933
    %v1033 = vpop.f32.mrb[0].mxu0
    %v1034 = vadd.f32 %v940, %v1033
    %v1035 = vpop.f32.mrb[0].mxu0
    %1036 = vmatprep.mubr.f32.mxu0 0.0
    %1037 = vmatmul.mubr.f32.gmra.mrb[0].mxu0 %v934
    %v1038 = vpop.f32.mrb[0].mxu0
    %v1039 = vadd.f32 %v940, %v1038
    %v1040 = vpop.f32.mrb[0].mxu0
    %1041 = vmatprep.mubr.f32.mxu0 0.0
    %1042 = vmatmul.mubr.f32.gmra.mrb[0].mxu0 %v935
    %v1043 = vpop.f32.mrb[0].mxu0
    %v1044 = vadd.f32 %v940, %v1043
    %v1045 = vpop.f32.mrb[0].mxu0
    %1046 = vdwg.mxu0
    %1047 = vst [vmem:[#allocation2] sm:$0xff] %v1009
    %1048 = vst [vmem:[#allocation2 + $0x8] sm:$0xff] %v1014
    %1049 = vst [vmem:[#allocation2 + $0x10] sm:$0xff] %v1019
    %1050 = vst [vmem:[#allocation2 + $0x18] sm:$0xff] %v1024
    %1051 = vst [vmem:[#allocation2 + $0x20] sm:$0xff] %v1029
    %1052 = vst [vmem:[#allocation2 + $0x28] sm:$0xff] %v1034
    %1053 = vst [vmem:[#allocation2 + $0x30] sm:$0xff] %v1039
    %1054 = vst [vmem:[#allocation2 + $0x38] sm:$0xff] %v1044
    %s1055 = scalar_lea.vmem [#allocation6], 8
    %v1056 = vld [vmem:[%s1055] sm:$0xff]
    %v1057 = vld [vmem:[#allocation2] sm:$0xff]
    %1058 = vmatprep.subr.mxu0 0.0
    %1059 = vmatpush1.msra.mxu0 %v911
    %1060 = vmatprep.subr.mxu0 0.0
    %1061 = vmatpush1.msra.mxu0 %v912
    %1062 = vmatprep.subr.mxu0 0.0
    %1063 = vmatpush1.msra.mxu0 %v913
    %1064 = vmatprep.subr.mxu0 0.0
    %1065 = vmatpush1.msra.mxu0 %v914
    %1066 = vmatprep.subr.mxu0 0.0
    %1067 = vmatpush1.msra.mxu0 %v915
    %1068 = vmatprep.subr.mxu0 0.0
    %1069 = vmatpush1.msra.mxu0 %v916
    %1070 = vmatprep.subr.mxu0 0.0
    %1071 = vmatpush1.msra.mxu0 %v917
    %1072 = vmatprep.subr.mxu0 0.0
    %1073 = vmatpush1.msra.mxu0 %v918
    %1074 = vmatprep.subr.mxu0 0.0
    %1075 = vmatpush1.msra.mxu0 %v919
    %1076 = vmatprep.subr.mxu0 0.0
    %1077 = vmatpush1.msra.mxu0 %v920
    %1078 = vmatprep.subr.mxu0 0.0
    %1079 = vmatpush1.msra.mxu0 %v921
    %1080 = vmatprep.subr.mxu0 0.0
    %1081 = vmatpush1.msra.mxu0 %v922
    %1082 = vmatprep.subr.mxu0 0.0
    %1083 = vmatpush1.msra.mxu0 %v923
    %1084 = vmatprep.subr.mxu0 0.0
    %1085 = vmatpush1.msra.mxu0 %v924
    %1086 = vmatprep.subr.mxu0 0.0
    %1087 = vmatpush1.msra.mxu0 %v925
    %1088 = vmatprep.subr.mxu0 0.0
    %1089 = vmatpush1.msra.mxu0 %v926
    %1090 = vmatprep.subr.mxu0 0.0
    %1091 = vmatpush1.msra.mxu0 0.0
    %1092 = vmatprep.subr.mxu0 0.0
    %1093 = vmatpush1.msra.mxu0 0.0
    %1094 = vmatprep.subr.mxu0 0.0
    %1095 = vmatpush1.msra.mxu0 0.0
    %1096 = vmatprep.subr.mxu0 0.0
    %1097 = vmatpush1.msra.mxu0 0.0
    %1098 = vmatprep.subr.mxu0 0.0
    %1099 = vmatpush1.msra.mxu0 0.0
    %1100 = vmatprep.subr.mxu0 0.0
    %1101 = vmatpush1.msra.mxu0 0.0
    %1102 = vmatprep.subr.mxu0 0.0
    %1103 = vmatpush1.msra.mxu0 0.0
    %1104 = vmatprep.subr.mxu0 0.0
    %1105 = vmatpush1.msra.mxu0 0.0
    %1106 = vmatprep.subr.mxu0 0.0
    %1107 = vmatpush1.msra.mxu0 0.0
    %1108 = vmatprep.subr.mxu0 0.0
    %1109 = vmatpush1.msra.mxu0 0.0
    %1110 = vmatprep.subr.mxu0 0.0
    %1111 = vmatpush1.msra.mxu0 0.0
    %1112 = vmatprep.subr.mxu0 0.0
    %1113 = vmatpush1.msra.mxu0 0.0
    %1114 = vmatprep.subr.mxu0 0.0
    %1115 = vmatpush1.msra.mxu0 0.0
    %1116 = vmatprep.subr.mxu0 0.0
    %1117 = vmatpush1.msra.mxu0 0.0
    %1118 = vmatprep.subr.mxu0 0.0
    %1119 = vmatpush1.msra.mxu0 0.0
    %1120 = vmatprep.subr.mxu0 0.0
    %1121 = vmatpush1.msra.mxu0 0.0
    %1122 = vmatprep.mubr.f32.mxu0 0.0
    %1123 = vmatmul.mubr.f32.gmra.mrb[0].mxu0 %v1056
    %v1124 = vpop.f32.mrb[0].mxu0
    %v1125 = vadd.f32 0.0, %v1124
    %v1126 = vpop.f32.mrb[0].mxu0
    %1127 = vdwg.mxu0
    %v1128 = vadd.f32 %v1057, %v1125
    %v1129 = vmax.f32 %v1128, 0.0
    %1130 = vst [vmem:[#allocation2] sm:$0xff] %v1129
    %v1131 = vld [vmem:[%s369] sm:$0xff]
    %1132 = vmatprep.subr.mxu0 0.0
    %1133 = vmatpush1.msra.mxu0 %v911
    %1134 = vmatprep.subr.mxu0 0.0
    %1135 = vmatpush1.msra.mxu0 %v912
    %1136 = vmatprep.subr.mxu0 0.0
    %1137 = vmatpush1.msra.mxu0 %v913
    %1138 = vmatprep.subr.mxu0 0.0
    %1139 = vmatpush1.msra.mxu0 %v914
    %1140 = vmatprep.subr.mxu0 0.0
    %1141 = vmatpush1.msra.mxu0 %v915
    %1142 = vmatprep.subr.mxu0 0.0
    %1143 = vmatpush1.msra.mxu0 %v916
    %1144 = vmatprep.subr.mxu0 0.0
    %1145 = vmatpush1.msra.mxu0 %v917
    %1146 = vmatprep.subr.mxu0 0.0
    %1147 = vmatpush1.msra.mxu0 %v918
    %1148 = vmatprep.subr.mxu0 0.0
    %1149 = vmatpush1.msra.mxu0 %v919
    %1150 = vmatprep.subr.mxu0 0.0
    %1151 = vmatpush1.msra.mxu0 %v920
    %1152 = vmatprep.subr.mxu0 0.0
    %1153 = vmatpush1.msra.mxu0 %v921
    %1154 = vmatprep.subr.mxu0 0.0
    %1155 = vmatpush1.msra.mxu0 %v922
    %1156 = vmatprep.subr.mxu0 0.0
    %1157 = vmatpush1.msra.mxu0 %v923
    %1158 = vmatprep.subr.mxu0 0.0
    %1159 = vmatpush1.msra.mxu0 %v924
    %1160 = vmatprep.subr.mxu0 0.0
    %1161 = vmatpush1.msra.mxu0 %v925
    %1162 = vmatprep.subr.mxu0 0.0
    %1163 = vmatpush1.msra.mxu0 %v926
    %1164 = vmatprep.subr.mxu0 0.0
    %1165 = vmatpush1.msra.mxu0 0.0
    %1166 = vmatprep.subr.mxu0 0.0
    %1167 = vmatpush1.msra.mxu0 0.0
    %1168 = vmatprep.subr.mxu0 0.0
    %1169 = vmatpush1.msra.mxu0 0.0
    %1170 = vmatprep.subr.mxu0 0.0
    %1171 = vmatpush1.msra.mxu0 0.0
    %1172 = vmatprep.subr.mxu0 0.0
    %1173 = vmatpush1.msra.mxu0 0.0
    %1174 = vmatprep.subr.mxu0 0.0
    %1175 = vmatpush1.msra.mxu0 0.0
    %1176 = vmatprep.subr.mxu0 0.0
    %1177 = vmatpush1.msra.mxu0 0.0
    %1178 = vmatprep.subr.mxu0 0.0
    %1179 = vmatpush1.msra.mxu0 0.0
    %1180 = vmatprep.subr.mxu0 0.0
    %1181 = vmatpush1.msra.mxu0 0.0
    %1182 = vmatprep.subr.mxu0 0.0
    %1183 = vmatpush1.msra.mxu0 0.0
    %1184 = vmatprep.subr.mxu0 0.0
    %1185 = vmatpush1.msra.mxu0 0.0
    %1186 = vmatprep.subr.mxu0 0.0
    %1187 = vmatpush1.msra.mxu0 0.0
    %1188 = vmatprep.subr.mxu0 0.0
    %1189 = vmatpush1.msra.mxu0 0.0
    %1190 = vmatprep.subr.mxu0 0.0
    %1191 = vmatpush1.msra.mxu0 0.0
    %1192 = vmatprep.subr.mxu0 0.0
    %1193 = vmatpush1.msra.mxu0 0.0
    %1194 = vmatprep.subr.mxu0 0.0
    %1195 = vmatpush1.msra.mxu0 0.0
    %1196 = vmatprep.mubr.f32.mxu0 0.0
    %1197 = vmatmul.mubr.f32.gmra.mrb[0].mxu0 %v1129
    %v1198 = vpop.f32.mrb[0].mxu0
    %v1199 = vadd.f32 0.0, %v1198
    %v1200 = vpop.f32.mrb[0].mxu0
    %1201 = vdwg.mxu0
    %v1202 = vadd.f32 %v1131, %v1199
    %v1203 = vmax.f32 %v1202, 0.0
    %1204 = vst [vmem:[%s369] sm:$0xff] %v1203
    %v1205 = vld [vmem:[%s444] sm:$0xff]
    %1206 = vmatprep.subr.mxu0 0.0
    %1207 = vmatpush1.msra.mxu0 %v911
    %1208 = vmatprep.subr.mxu0 0.0
    %1209 = vmatpush1.msra.mxu0 %v912
    %1210 = vmatprep.subr.mxu0 0.0
    %1211 = vmatpush1.msra.mxu0 %v913
    %1212 = vmatprep.subr.mxu0 0.0
    %1213 = vmatpush1.msra.mxu0 %v914
    %1214 = vmatprep.subr.mxu0 0.0
    %1215 = vmatpush1.msra.mxu0 %v915
    %1216 = vmatprep.subr.mxu0 0.0
    %1217 = vmatpush1.msra.mxu0 %v916
    %1218 = vmatprep.subr.mxu0 0.0
    %1219 = vmatpush1.msra.mxu0 %v917
    %1220 = vmatprep.subr.mxu0 0.0
    %1221 = vmatpush1.msra.mxu0 %v918
    %1222 = vmatprep.subr.mxu0 0.0
    %1223 = vmatpush1.msra.mxu0 %v919
    %1224 = vmatprep.subr.mxu0 0.0
    %1225 = vmatpush1.msra.mxu0 %v920
    %1226 = vmatprep.subr.mxu0 0.0
    %1227 = vmatpush1.msra.mxu0 %v921
    %1228 = vmatprep.subr.mxu0 0.0
    %1229 = vmatpush1.msra.mxu0 %v922
    %1230 = vmatprep.subr.mxu0 0.0
    %1231 = vmatpush1.msra.mxu0 %v923
    %1232 = vmatprep.subr.mxu0 0.0
    %1233 = vmatpush1.msra.mxu0 %v924
    %1234 = vmatprep.subr.mxu0 0.0
    %1235 = vmatpush1.msra.mxu0 %v925
    %1236 = vmatprep.subr.mxu0 0.0
    %1237 = vmatpush1.msra.mxu0 %v926
    %1238 = vmatprep.subr.mxu0 0.0
    %1239 = vmatpush1.msra.mxu0 0.0
    %1240 = vmatprep.subr.mxu0 0.0
    %1241 = vmatpush1.msra.mxu0 0.0
    %1242 = vmatprep.subr.mxu0 0.0
    %1243 = vmatpush1.msra.mxu0 0.0
    %1244 = vmatprep.subr.mxu0 0.0
    %1245 = vmatpush1.msra.mxu0 0.0
    %1246 = vmatprep.subr.mxu0 0.0
    %1247 = vmatpush1.msra.mxu0 0.0
    %1248 = vmatprep.subr.mxu0 0.0
    %1249 = vmatpush1.msra.mxu0 0.0
    %1250 = vmatprep.subr.mxu0 0.0
    %1251 = vmatpush1.msra.mxu0 0.0
    %1252 = vmatprep.subr.mxu0 0.0
    %1253 = vmatpush1.msra.mxu0 0.0
    %1254 = vmatprep.subr.mxu0 0.0
    %1255 = vmatpush1.msra.mxu0 0.0
    %1256 = vmatprep.subr.mxu0 0.0
    %1257 = vmatpush1.msra.mxu0 0.0
    %1258 = vmatprep.subr.mxu0 0.0
    %1259 = vmatpush1.msra.mxu0 0.0
    %1260 = vmatprep.subr.mxu0 0.0
    %1261 = vmatpush1.msra.mxu0 0.0
    %1262 = vmatprep.subr.mxu0 0.0
    %1263 = vmatpush1.msra.mxu0 0.0
    %1264 = vmatprep.subr.mxu0 0.0
    %1265 = vmatpush1.msra.mxu0 0.0
    %1266 = vmatprep.subr.mxu0 0.0
    %1267 = vmatpush1.msra.mxu0 0.0
    %1268 = vmatprep.subr.mxu0 0.0
    %1269 = vmatpush1.msra.mxu0 0.0
    %1270 = vmatprep.mubr.f32.mxu0 0.0
    %1271 = vmatmul.mubr.f32.gmra.mrb[0].mxu0 %v1203
    %v1272 = vpop.f32.mrb[0].mxu0
    %v1273 = vadd.f32 0.0, %v1272
    %v1274 = vpop.f32.mrb[0].mxu0
    %1275 = vdwg.mxu0
    %v1276 = vadd.f32 %v1205, %v1273
    %v1277 = vmax.f32 %v1276, 0.0
    %1278 = vst [vmem:[%s444] sm:$0xff] %v1277
    %v1279 = vld [vmem:[%s519] sm:$0xff]
    %1280 = vmatprep.subr.mxu0 0.0
    %1281 = vmatpush1.msra.mxu0 %v911
    %1282 = vmatprep.subr.mxu0 0.0
    %1283 = vmatpush1.msra.mxu0 %v912
    %1284 = vmatprep.subr.mxu0 0.0
    %1285 = vmatpush1.msra.mxu0 %v913
    %1286 = vmatprep.subr.mxu0 0.0
    %1287 = vmatpush1.msra.mxu0 %v914
    %1288 = vmatprep.subr.mxu0 0.0
    %1289 = vmatpush1.msra.mxu0 %v915
    %1290 = vmatprep.subr.mxu0 0.0
    %1291 = vmatpush1.msra.mxu0 %v916
    %1292 = vmatprep.subr.mxu0 0.0
    %1293 = vmatpush1.msra.mxu0 %v917
    %1294 = vmatprep.subr.mxu0 0.0
    %1295 = vmatpush1.msra.mxu0 %v918
    %1296 = vmatprep.subr.mxu0 0.0
    %1297 = vmatpush1.msra.mxu0 %v919
    %1298 = vmatprep.subr.mxu0 0.0
    %1299 = vmatpush1.msra.mxu0 %v920
    %1300 = vmatprep.subr.mxu0 0.0
    %1301 = vmatpush1.msra.mxu0 %v921
    %1302 = vmatprep.subr.mxu0 0.0
    %1303 = vmatpush1.msra.mxu0 %v922
    %1304 = vmatprep.subr.mxu0 0.0
    %1305 = vmatpush1.msra.mxu0 %v923
    %1306 = vmatprep.subr.mxu0 0.0
    %1307 = vmatpush1.msra.mxu0 %v924
    %1308 = vmatprep.subr.mxu0 0.0
    %1309 = vmatpush1.msra.mxu0 %v925
    %1310 = vmatprep.subr.mxu0 0.0
    %1311 = vmatpush1.msra.mxu0 %v926
    %1312 = vmatprep.subr.mxu0 0.0
    %1313 = vmatpush1.msra.mxu0 0.0
    %1314 = vmatprep.subr.mxu0 0.0
    %1315 = vmatpush1.msra.mxu0 0.0
    %1316 = vmatprep.subr.mxu0 0.0
    %1317 = vmatpush1.msra.mxu0 0.0
    %1318 = vmatprep.subr.mxu0 0.0
    %1319 = vmatpush1.msra.mxu0 0.0
    %1320 = vmatprep.subr.mxu0 0.0
    %1321 = vmatpush1.msra.mxu0 0.0
    %1322 = vmatprep.subr.mxu0 0.0
    %1323 = vmatpush1.msra.mxu0 0.0
    %1324 = vmatprep.subr.mxu0 0.0
    %1325 = vmatpush1.msra.mxu0 0.0
    %1326 = vmatprep.subr.mxu0 0.0
    %1327 = vmatpush1.msra.mxu0 0.0
    %1328 = vmatprep.subr.mxu0 0.0
    %1329 = vmatpush1.msra.mxu0 0.0
    %1330 = vmatprep.subr.mxu0 0.0
    %1331 = vmatpush1.msra.mxu0 0.0
    %1332 = vmatprep.subr.mxu0 0.0
    %1333 = vmatpush1.msra.mxu0 0.0
    %1334 = vmatprep.subr.mxu0 0.0
    %1335 = vmatpush1.msra.mxu0 0.0
    %1336 = vmatprep.subr.mxu0 0.0
    %1337 = vmatpush1.msra.mxu0 0.0
    %1338 = vmatprep.subr.mxu0 0.0
    %1339 = vmatpush1.msra.mxu0 0.0
    %1340 = vmatprep.subr.mxu0 0.0
    %1341 = vmatpush1.msra.mxu0 0.0
    %1342 = vmatprep.subr.mxu0 0.0
    %1343 = vmatpush1.msra.mxu0 0.0
    %1344 = vmatprep.mubr.f32.mxu0 0.0
    %1345 = vmatmul.mubr.f32.gmra.mrb[0].mxu0 %v1277
    %v1346 = vpop.f32.mrb[0].mxu0
    %v1347 = vadd.f32 0.0, %v1346
    %v1348 = vpop.f32.mrb[0].mxu0
    %1349 = vdwg.mxu0
    %v1350 = vadd.f32 %v1279, %v1347
    %v1351 = vmax.f32 %v1350, 0.0
    %1352 = vst [vmem:[%s519] sm:$0xff] %v1351
    %v1353 = vld [vmem:[%s594] sm:$0xff]
    %1354 = vmatprep.subr.mxu0 0.0
    %1355 = vmatpush1.msra.mxu0 %v911
    %1356 = vmatprep.subr.mxu0 0.0
    %1357 = vmatpush1.msra.mxu0 %v912
    %1358 = vmatprep.subr.mxu0 0.0
    %1359 = vmatpush1.msra.mxu0 %v913
    %1360 = vmatprep.subr.mxu0 0.0
    %1361 = vmatpush1.msra.mxu0 %v914
    %1362 = vmatprep.subr.mxu0 0.0
    %1363 = vmatpush1.msra.mxu0 %v915
    %1364 = vmatprep.subr.mxu0 0.0
    %1365 = vmatpush1.msra.mxu0 %v916
    %1366 = vmatprep.subr.mxu0 0.0
    %1367 = vmatpush1.msra.mxu0 %v917
    %1368 = vmatprep.subr.mxu0 0.0
    %1369 = vmatpush1.msra.mxu0 %v918
    %1370 = vmatprep.subr.mxu0 0.0
    %1371 = vmatpush1.msra.mxu0 %v919
    %1372 = vmatprep.subr.mxu0 0.0
    %1373 = vmatpush1.msra.mxu0 %v920
    %1374 = vmatprep.subr.mxu0 0.0
    %1375 = vmatpush1.msra.mxu0 %v921
    %1376 = vmatprep.subr.mxu0 0.0
    %1377 = vmatpush1.msra.mxu0 %v922
    %1378 = vmatprep.subr.mxu0 0.0
    %1379 = vmatpush1.msra.mxu0 %v923
    %1380 = vmatprep.subr.mxu0 0.0
    %1381 = vmatpush1.msra.mxu0 %v924
    %1382 = vmatprep.subr.mxu0 0.0
    %1383 = vmatpush1.msra.mxu0 %v925
    %1384 = vmatprep.subr.mxu0 0.0
    %1385 = vmatpush1.msra.mxu0 %v926
    %1386 = vmatprep.subr.mxu0 0.0
    %1387 = vmatpush1.msra.mxu0 0.0
    %1388 = vmatprep.subr.mxu0 0.0
    %1389 = vmatpush1.msra.mxu0 0.0
    %1390 = vmatprep.subr.mxu0 0.0
    %1391 = vmatpush1.msra.mxu0 0.0
    %1392 = vmatprep.subr.mxu0 0.0
    %1393 = vmatpush1.msra.mxu0 0.0
    %1394 = vmatprep.subr.mxu0 0.0
    %1395 = vmatpush1.msra.mxu0 0.0
    %1396 = vmatprep.subr.mxu0 0.0
    %1397 = vmatpush1.msra.mxu0 0.0
    %1398 = vmatprep.subr.mxu0 0.0
    %1399 = vmatpush1.msra.mxu0 0.0
    %1400 = vmatprep.subr.mxu0 0.0
    %1401 = vmatpush1.msra.mxu0 0.0
    %1402 = vmatprep.subr.mxu0 0.0
    %1403 = vmatpush1.msra.mxu0 0.0
    %1404 = vmatprep.subr.mxu0 0.0
    %1405 = vmatpush1.msra.mxu0 0.0
    %1406 = vmatprep.subr.mxu0 0.0
    %1407 = vmatpush1.msra.mxu0 0.0
    %1408 = vmatprep.subr.mxu0 0.0
    %1409 = vmatpush1.msra.mxu0 0.0
    %1410 = vmatprep.subr.mxu0 0.0
    %1411 = vmatpush1.msra.mxu0 0.0
    %1412 = vmatprep.subr.mxu0 0.0
    %1413 = vmatpush1.msra.mxu0 0.0
    %1414 = vmatprep.subr.mxu0 0.0
    %1415 = vmatpush1.msra.mxu0 0.0
    %1416 = vmatprep.subr.mxu0 0.0
    %1417 = vmatpush1.msra.mxu0 0.0
    %1418 = vmatprep.mubr.f32.mxu0 0.0
    %1419 = vmatmul.mubr.f32.gmra.mrb[0].mxu0 %v1351
    %v1420 = vpop.f32.mrb[0].mxu0
    %v1421 = vadd.f32 0.0, %v1420
    %v1422 = vpop.f32.mrb[0].mxu0
    %1423 = vdwg.mxu0
    %v1424 = vadd.f32 %v1353, %v1421
    %v1425 = vmax.f32 %v1424, 0.0
    %1426 = vst [vmem:[%s594] sm:$0xff] %v1425
    %v1427 = vld [vmem:[%s669] sm:$0xff]
    %1428 = vmatprep.subr.mxu0 0.0
    %1429 = vmatpush1.msra.mxu0 %v911
    %1430 = vmatprep.subr.mxu0 0.0
    %1431 = vmatpush1.msra.mxu0 %v912
    %1432 = vmatprep.subr.mxu0 0.0
    %1433 = vmatpush1.msra.mxu0 %v913
    %1434 = vmatprep.subr.mxu0 0.0
    %1435 = vmatpush1.msra.mxu0 %v914
    %1436 = vmatprep.subr.mxu0 0.0
    %1437 = vmatpush1.msra.mxu0 %v915
    %1438 = vmatprep.subr.mxu0 0.0
    %1439 = vmatpush1.msra.mxu0 %v916
    %1440 = vmatprep.subr.mxu0 0.0
    %1441 = vmatpush1.msra.mxu0 %v917
    %1442 = vmatprep.subr.mxu0 0.0
    %1443 = vmatpush1.msra.mxu0 %v918
    %1444 = vmatprep.subr.mxu0 0.0
    %1445 = vmatpush1.msra.mxu0 %v919
    %1446 = vmatprep.subr.mxu0 0.0
    %1447 = vmatpush1.msra.mxu0 %v920
    %1448 = vmatprep.subr.mxu0 0.0
    %1449 = vmatpush1.msra.mxu0 %v921
    %1450 = vmatprep.subr.mxu0 0.0
    %1451 = vmatpush1.msra.mxu0 %v922
    %1452 = vmatprep.subr.mxu0 0.0
    %1453 = vmatpush1.msra.mxu0 %v923
    %1454 = vmatprep.subr.mxu0 0.0
    %1455 = vmatpush1.msra.mxu0 %v924
    %1456 = vmatprep.subr.mxu0 0.0
    %1457 = vmatpush1.msra.mxu0 %v925
    %1458 = vmatprep.subr.mxu0 0.0
    %1459 = vmatpush1.msra.mxu0 %v926
    %1460 = vmatprep.subr.mxu0 0.0
    %1461 = vmatpush1.msra.mxu0 0.0
    %1462 = vmatprep.subr.mxu0 0.0
    %1463 = vmatpush1.msra.mxu0 0.0
    %1464 = vmatprep.subr.mxu0 0.0
    %1465 = vmatpush1.msra.mxu0 0.0
    %1466 = vmatprep.subr.mxu0 0.0
    %1467 = vmatpush1.msra.mxu0 0.0
    %1468 = vmatprep.subr.mxu0 0.0
    %1469 = vmatpush1.msra.mxu0 0.0
    %1470 = vmatprep.subr.mxu0 0.0
    %1471 = vmatpush1.msra.mxu0 0.0
    %1472 = vmatprep.subr.mxu0 0.0
    %1473 = vmatpush1.msra.mxu0 0.0
    %1474 = vmatprep.subr.mxu0 0.0
    %1475 = vmatpush1.msra.mxu0 0.0
    %1476 = vmatprep.subr.mxu0 0.0
    %1477 = vmatpush1.msra.mxu0 0.0
    %1478 = vmatprep.subr.mxu0 0.0
    %1479 = vmatpush1.msra.mxu0 0.0
    %1480 = vmatprep.subr.mxu0 0.0
    %1481 = vmatpush1.msra.mxu0 0.0
    %1482 = vmatprep.subr.mxu0 0.0
    %1483 = vmatpush1.msra.mxu0 0.0
    %1484 = vmatprep.subr.mxu0 0.0
    %1485 = vmatpush1.msra.mxu0 0.0
    %1486 = vmatprep.subr.mxu0 0.0
    %1487 = vmatpush1.msra.mxu0 0.0
    %1488 = vmatprep.subr.mxu0 0.0
    %1489 = vmatpush1.msra.mxu0 0.0
    %1490 = vmatprep.subr.mxu0 0.0
    %1491 = vmatpush1.msra.mxu0 0.0
    %1492 = vmatprep.mubr.f32.mxu0 0.0
    %1493 = vmatmul.mubr.f32.gmra.mrb[0].mxu0 %v1425
    %v1494 = vpop.f32.mrb[0].mxu0
    %v1495 = vadd.f32 0.0, %v1494
    %v1496 = vpop.f32.mrb[0].mxu0
    %1497 = vdwg.mxu0
    %v1498 = vadd.f32 %v1427, %v1495
    %v1499 = vmax.f32 %v1498, 0.0
    %1500 = vst [vmem:[%s669] sm:$0xff] %v1499
    %v1501 = vld [vmem:[%s744] sm:$0xff]
    %1502 = vmatprep.subr.mxu0 0.0
    %1503 = vmatpush1.msra.mxu0 %v911
    %1504 = vmatprep.subr.mxu0 0.0
    %1505 = vmatpush1.msra.mxu0 %v912
    %1506 = vmatprep.subr.mxu0 0.0
    %1507 = vmatpush1.msra.mxu0 %v913
    %1508 = vmatprep.subr.mxu0 0.0
    %1509 = vmatpush1.msra.mxu0 %v914
    %1510 = vmatprep.subr.mxu0 0.0
    %1511 = vmatpush1.msra.mxu0 %v915
    %1512 = vmatprep.subr.mxu0 0.0
    %1513 = vmatpush1.msra.mxu0 %v916
    %1514 = vmatprep.subr.mxu0 0.0
    %1515 = vmatpush1.msra.mxu0 %v917
    %1516 = vmatprep.subr.mxu0 0.0
    %1517 = vmatpush1.msra.mxu0 %v918
    %1518 = vmatprep.subr.mxu0 0.0
    %1519 = vmatpush1.msra.mxu0 %v919
    %1520 = vmatprep.subr.mxu0 0.0
    %1521 = vmatpush1.msra.mxu0 %v920
    %1522 = vmatprep.subr.mxu0 0.0
    %1523 = vmatpush1.msra.mxu0 %v921
    %1524 = vmatprep.subr.mxu0 0.0
    %1525 = vmatpush1.msra.mxu0 %v922
    %1526 = vmatprep.subr.mxu0 0.0
    %1527 = vmatpush1.msra.mxu0 %v923
    %1528 = vmatprep.subr.mxu0 0.0
    %1529 = vmatpush1.msra.mxu0 %v924
    %1530 = vmatprep.subr.mxu0 0.0
    %1531 = vmatpush1.msra.mxu0 %v925
    %1532 = vmatprep.subr.mxu0 0.0
    %1533 = vmatpush1.msra.mxu0 %v926
    %1534 = vmatprep.subr.mxu0 0.0
    %1535 = vmatpush1.msra.mxu0 0.0
    %1536 = vmatprep.subr.mxu0 0.0
    %1537 = vmatpush1.msra.mxu0 0.0
    %1538 = vmatprep.subr.mxu0 0.0
    %1539 = vmatpush1.msra.mxu0 0.0
    %1540 = vmatprep.subr.mxu0 0.0
    %1541 = vmatpush1.msra.mxu0 0.0
    %1542 = vmatprep.subr.mxu0 0.0
    %1543 = vmatpush1.msra.mxu0 0.0
    %1544 = vmatprep.subr.mxu0 0.0
    %1545 = vmatpush1.msra.mxu0 0.0
    %1546 = vmatprep.subr.mxu0 0.0
    %1547 = vmatpush1.msra.mxu0 0.0
    %1548 = vmatprep.subr.mxu0 0.0
    %1549 = vmatpush1.msra.mxu0 0.0
    %1550 = vmatprep.subr.mxu0 0.0
    %1551 = vmatpush1.msra.mxu0 0.0
    %1552 = vmatprep.subr.mxu0 0.0
    %1553 = vmatpush1.msra.mxu0 0.0
    %1554 = vmatprep.subr.mxu0 0.0
    %1555 = vmatpush1.msra.mxu0 0.0
    %1556 = vmatprep.subr.mxu0 0.0
    %1557 = vmatpush1.msra.mxu0 0.0
    %1558 = vmatprep.subr.mxu0 0.0
    %1559 = vmatpush1.msra.mxu0 0.0
    %1560 = vmatprep.subr.mxu0 0.0
    %1561 = vmatpush1.msra.mxu0 0.0
    %1562 = vmatprep.subr.mxu0 0.0
    %1563 = vmatpush1.msra.mxu0 0.0
    %1564 = vmatprep.subr.mxu0 0.0
    %1565 = vmatpush1.msra.mxu0 0.0
    %1566 = vmatprep.mubr.f32.mxu0 0.0
    %1567 = vmatmul.mubr.f32.gmra.mrb[0].mxu0 %v1499
    %v1568 = vpop.f32.mrb[0].mxu0
    %v1569 = vadd.f32 0.0, %v1568
    %v1570 = vpop.f32.mrb[0].mxu0
    %1571 = vdwg.mxu0
    %v1572 = vadd.f32 %v1501, %v1569
    %v1573 = vmax.f32 %v1572, 0.0
    %1574 = vst [vmem:[%s744] sm:$0xff] %v1573
    %v1575 = vld [vmem:[%s819] sm:$0xff]
    %1576 = vmatprep.subr.mxu0 0.0
    %1577 = vmatpush1.msra.mxu0 %v911
    %1578 = vmatprep.subr.mxu0 0.0
    %1579 = vmatpush1.msra.mxu0 %v912
    %1580 = vmatprep.subr.mxu0 0.0
    %1581 = vmatpush1.msra.mxu0 %v913
    %1582 = vmatprep.subr.mxu0 0.0
    %1583 = vmatpush1.msra.mxu0 %v914
    %1584 = vmatprep.subr.mxu0 0.0
    %1585 = vmatpush1.msra.mxu0 %v915
    %1586 = vmatprep.subr.mxu0 0.0
    %1587 = vmatpush1.msra.mxu0 %v916
    %1588 = vmatprep.subr.mxu0 0.0
    %1589 = vmatpush1.msra.mxu0 %v917
    %1590 = vmatprep.subr.mxu0 0.0
    %1591 = vmatpush1.msra.mxu0 %v918
    %1592 = vmatprep.subr.mxu0 0.0
    %1593 = vmatpush1.msra.mxu0 %v919
    %1594 = vmatprep.subr.mxu0 0.0
    %1595 = vmatpush1.msra.mxu0 %v920
    %1596 = vmatprep.subr.mxu0 0.0
    %1597 = vmatpush1.msra.mxu0 %v921
    %1598 = vmatprep.subr.mxu0 0.0
    %1599 = vmatpush1.msra.mxu0 %v922
    %1600 = vmatprep.subr.mxu0 0.0
    %1601 = vmatpush1.msra.mxu0 %v923
    %1602 = vmatprep.subr.mxu0 0.0
    %1603 = vmatpush1.msra.mxu0 %v924
    %1604 = vmatprep.subr.mxu0 0.0
    %1605 = vmatpush1.msra.mxu0 %v925
    %1606 = vmatprep.subr.mxu0 0.0
    %1607 = vmatpush1.msra.mxu0 %v926
    %1608 = vmatprep.subr.mxu0 0.0
    %1609 = vmatpush1.msra.mxu0 0.0
    %1610 = vmatprep.subr.mxu0 0.0
    %1611 = vmatpush1.msra.mxu0 0.0
    %1612 = vmatprep.subr.mxu0 0.0
    %1613 = vmatpush1.msra.mxu0 0.0
    %1614 = vmatprep.subr.mxu0 0.0
    %1615 = vmatpush1.msra.mxu0 0.0
    %1616 = vmatprep.subr.mxu0 0.0
    %1617 = vmatpush1.msra.mxu0 0.0
    %1618 = vmatprep.subr.mxu0 0.0
    %1619 = vmatpush1.msra.mxu0 0.0
    %1620 = vmatprep.subr.mxu0 0.0
    %1621 = vmatpush1.msra.mxu0 0.0
    %1622 = vmatprep.subr.mxu0 0.0
    %1623 = vmatpush1.msra.mxu0 0.0
    %1624 = vmatprep.subr.mxu0 0.0
    %1625 = vmatpush1.msra.mxu0 0.0
    %1626 = vmatprep.subr.mxu0 0.0
    %1627 = vmatpush1.msra.mxu0 0.0
    %1628 = vmatprep.subr.mxu0 0.0
    %1629 = vmatpush1.msra.mxu0 0.0
    %1630 = vmatprep.subr.mxu0 0.0
    %1631 = vmatpush1.msra.mxu0 0.0
    %1632 = vmatprep.subr.mxu0 0.0
    %1633 = vmatpush1.msra.mxu0 0.0
    %1634 = vmatprep.subr.mxu0 0.0
    %1635 = vmatpush1.msra.mxu0 0.0
    %1636 = vmatprep.subr.mxu0 0.0
    %1637 = vmatpush1.msra.mxu0 0.0
    %1638 = vmatprep.subr.mxu0 0.0
    %1639 = vmatpush1.msra.mxu0 0.0
    %1640 = vmatprep.mubr.f32.mxu0 0.0
    %1641 = vmatmul.mubr.f32.gmra.mrb[0].mxu0 %v1573
    %v1642 = vpop.f32.mrb[0].mxu0
    %v1643 = vadd.f32 0.0, %v1642
    %v1644 = vpop.f32.mrb[0].mxu0
    %1645 = vdwg.mxu0
    %v1646 = vadd.f32 %v1575, %v1643
    %v1647 = vmax.f32 %v1646, 0.0
    %1648 = vst [vmem:[%s819] sm:$0xff] %v1647
    %s1649 = scalar_lea.vmem [#allocation16], 8
    %1650 = vst [vmem:[%s1649] sm:$0xff] %v1647
    %v1651 = vld [vmem:[#allocation14] sm:$0xff]
    %v1652 = vld [vmem:[#allocation14 + $0x8] sm:$0xff]
    %v1653 = vld [vmem:[#allocation14 + $0x10] sm:$0xff]
    %v1654 = vld [vmem:[#allocation14 + $0x18] sm:$0xff]
    %v1655 = vld [vmem:[#allocation14 + $0x20] sm:$0xff]
    %v1656 = vld [vmem:[#allocation14 + $0x28] sm:$0xff]
    %v1657 = vld [vmem:[#allocation14 + $0x30] sm:$0xff]
    %v1658 = vld [vmem:[#allocation14 + $0x38] sm:$0xff]
    %v1659 = vld [vmem:[#allocation14 + $0x40] sm:$0xff]
    %v1660 = vld [vmem:[#allocation14 + $0x48] sm:$0xff]
    %v1661 = vld [vmem:[#allocation14 + $0x50] sm:$0xff]
    %v1662 = vld [vmem:[#allocation14 + $0x58] sm:$0xff]
    %v1663 = vld [vmem:[#allocation14 + $0x60] sm:$0xff]
    %v1664 = vld [vmem:[#allocation14 + $0x68] sm:$0xff]
    %v1665 = vld [vmem:[#allocation14 + $0x70] sm:$0xff]
    %v1666 = vld [vmem:[#allocation14 + $0x78] sm:$0xff]
    %v1667 = vld [vmem:[%s9] sm:$0x1]
    %v1668 = vld [vmem:[#allocation2] sm:$0xff]
    %v1669 = vld [vmem:[#allocation2 + $0x8] sm:$0xff]
    %v1670 = vld [vmem:[#allocation2 + $0x10] sm:$0xff]
    %v1671 = vld [vmem:[#allocation2 + $0x18] sm:$0xff]
    %v1672 = vld [vmem:[#allocation2 + $0x20] sm:$0xff]
    %v1673 = vld [vmem:[#allocation2 + $0x28] sm:$0xff]
    %v1674 = vld [vmem:[#allocation2 + $0x30] sm:$0xff]
    %v1675 = vld [vmem:[#allocation2 + $0x38] sm:$0xff]
    %v1677 = vlaneseq
    %v1678 = vshrl.u32 %v1677, 7
    %v1679 = vsub.s32 0, %v1678
    %v1680 = vrot.slane %v1667, %v1679
    %1682 = vmatprep.subr.mxu0 0.0
    %1683 = vmatpush1.msra.mxu0 %v1651
    %1684 = vmatprep.subr.mxu0 0.0
    %1685 = vmatpush1.msra.mxu0 %v1652
    %1686 = vmatprep.subr.mxu0 0.0
    %1687 = vmatpush1.msra.mxu0 %v1653
    %1688 = vmatprep.subr.mxu0 0.0
    %1689 = vmatpush1.msra.mxu0 %v1654
    %1690 = vmatprep.subr.mxu0 0.0
    %1691 = vmatpush1.msra.mxu0 %v1655
    %1692 = vmatprep.subr.mxu0 0.0
    %1693 = vmatpush1.msra.mxu0 %v1656
    %1694 = vmatprep.subr.mxu0 0.0
    %1695 = vmatpush1.msra.mxu0 %v1657
    %1696 = vmatprep.subr.mxu0 0.0
    %1697 = vmatpush1.msra.mxu0 %v1658
    %1698 = vmatprep.subr.mxu0 0.0
    %1699 = vmatpush1.msra.mxu0 %v1659
    %1700 = vmatprep.subr.mxu0 0.0
    %1701 = vmatpush1.msra.mxu0 %v1660
    %1702 = vmatprep.subr.mxu0 0.0
    %1703 = vmatpush1.msra.mxu0 %v1661
    %1704 = vmatprep.subr.mxu0 0.0
    %1705 = vmatpush1.msra.mxu0 %v1662
    %1706 = vmatprep.subr.mxu0 0.0
    %1707 = vmatpush1.msra.mxu0 %v1663
    %1708 = vmatprep.subr.mxu0 0.0
    %1709 = vmatpush1.msra.mxu0 %v1664
    %1710 = vmatprep.subr.mxu0 0.0
    %1711 = vmatpush1.msra.mxu0 %v1665
    %1712 = vmatprep.subr.mxu0 0.0
    %1713 = vmatpush1.msra.mxu0 %v1666
    %1714 = vmatprep.subr.mxu0 0.0
    %1715 = vmatpush1.msra.mxu0 0.0
    %1716 = vmatprep.subr.mxu0 0.0
    %1717 = vmatpush1.msra.mxu0 0.0
    %1718 = vmatprep.subr.mxu0 0.0
    %1719 = vmatpush1.msra.mxu0 0.0
    %1720 = vmatprep.subr.mxu0 0.0
    %1721 = vmatpush1.msra.mxu0 0.0
    %1722 = vmatprep.subr.mxu0 0.0
    %1723 = vmatpush1.msra.mxu0 0.0
    %1724 = vmatprep.subr.mxu0 0.0
    %1725 = vmatpush1.msra.mxu0 0.0
    %1726 = vmatprep.subr.mxu0 0.0
    %1727 = vmatpush1.msra.mxu0 0.0
    %1728 = vmatprep.subr.mxu0 0.0
    %1729 = vmatpush1.msra.mxu0 0.0
    %1730 = vmatprep.subr.mxu0 0.0
    %1731 = vmatpush1.msra.mxu0 0.0
    %1732 = vmatprep.subr.mxu0 0.0
    %1733 = vmatpush1.msra.mxu0 0.0
    %1734 = vmatprep.subr.mxu0 0.0
    %1735 = vmatpush1.msra.mxu0 0.0
    %1736 = vmatprep.subr.mxu0 0.0
    %1737 = vmatpush1.msra.mxu0 0.0
    %1738 = vmatprep.subr.mxu0 0.0
    %1739 = vmatpush1.msra.mxu0 0.0
    %1740 = vmatprep.subr.mxu0 0.0
    %1741 = vmatpush1.msra.mxu0 0.0
    %1742 = vmatprep.subr.mxu0 0.0
    %1743 = vmatpush1.msra.mxu0 0.0
    %1744 = vmatprep.subr.mxu0 0.0
    %1745 = vmatpush1.msra.mxu0 0.0
    %1746 = vmatprep.mubr.f32.mxu0 0.0
    %1747 = vmatmul.mubr.f32.gmra.mrb[0].mxu0 %v1668
    %v1748 = vpop.f32.mrb[0].mxu0
    %v1749 = vadd.f32 %v1680, %v1748
    %v1750 = vpop.f32.mrb[0].mxu0
    %1751 = vmatprep.mubr.f32.mxu0 0.0
    %1752 = vmatmul.mubr.f32.gmra.mrb[0].mxu0 %v1669
    %v1753 = vpop.f32.mrb[0].mxu0
    %v1754 = vadd.f32 %v1680, %v1753
    %v1755 = vpop.f32.mrb[0].mxu0
    %1756 = vmatprep.mubr.f32.mxu0 0.0
    %1757 = vmatmul.mubr.f32.gmra.mrb[0].mxu0 %v1670
    %v1758 = vpop.f32.mrb[0].mxu0
    %v1759 = vadd.f32 %v1680, %v1758
    %v1760 = vpop.f32.mrb[0].mxu0
    %1761 = vmatprep.mubr.f32.mxu0 0.0
    %1762 = vmatmul.mubr.f32.gmra.mrb[0].mxu0 %v1671
    %v1763 = vpop.f32.mrb[0].mxu0
    %v1764 = vadd.f32 %v1680, %v1763
    %v1765 = vpop.f32.mrb[0].mxu0
    %1766 = vmatprep.mubr.f32.mxu0 0.0
    %1767 = vmatmul.mubr.f32.gmra.mrb[0].mxu0 %v1672
    %v1768 = vpop.f32.mrb[0].mxu0
    %v1769 = vadd.f32 %v1680, %v1768
    %v1770 = vpop.f32.mrb[0].mxu0
    %1771 = vmatprep.mubr.f32.mxu0 0.0
    %1772 = vmatmul.mubr.f32.gmra.mrb[0].mxu0 %v1673
    %v1773 = vpop.f32.mrb[0].mxu0
    %v1774 = vadd.f32 %v1680, %v1773
    %v1775 = vpop.f32.mrb[0].mxu0
    %1776 = vmatprep.mubr.f32.mxu0 0.0
    %1777 = vmatmul.mubr.f32.gmra.mrb[0].mxu0 %v1674
    %v1778 = vpop.f32.mrb[0].mxu0
    %v1779 = vadd.f32 %v1680, %v1778
    %v1780 = vpop.f32.mrb[0].mxu0
    %1781 = vmatprep.mubr.f32.mxu0 0.0
    %1782 = vmatmul.mubr.f32.gmra.mrb[0].mxu0 %v1675
    %v1783 = vpop.f32.mrb[0].mxu0
    %v1784 = vadd.f32 %v1680, %v1783
    %v1785 = vpop.f32.mrb[0].mxu0
    %1786 = vdwg.mxu0
    %v1787 = vtanh.pop %v1749
    %v1788 = vtanh.pop %v1754
    %v1789 = vtanh.pop %v1759
    %v1790 = vtanh.pop %v1764
    %v1791 = vtanh.pop %v1769
    %v1792 = vtanh.pop %v1774
    %v1793 = vtanh.pop %v1779
    %v1794 = vtanh.pop %v1784
    %1795 = vst [vmem:[#allocation15] sm:$0xff] %v1787
    %1796 = vst [vmem:[#allocation15 + $0x8] sm:$0xff] %v1788
    %1797 = vst [vmem:[#allocation15 + $0x10] sm:$0xff] %v1789
    %1798 = vst [vmem:[#allocation15 + $0x18] sm:$0xff] %v1790
    %1799 = vst [vmem:[#allocation15 + $0x20] sm:$0xff] %v1791
    %1800 = vst [vmem:[#allocation15 + $0x28] sm:$0xff] %v1792
    %1801 = vst [vmem:[#allocation15 + $0x30] sm:$0xff] %v1793
    %1802 = vst [vmem:[#allocation15 + $0x38] sm:$0xff] %v1794
    // Predicated region
    $region70: #{tpu_custom_call.1} parent=1 // pred_check
      _
    $region71: #{tpu_custom_call.1} parent=1 // pred_check_branch
      %1804 = sbr.rel (0) target = $region73
    $region72: #{tpu_custom_call.1} parent=1 // pred_region
      %s1806 = ssub.s32 1024, 1024
      %1807 = vsyncadd [#allocation5], %s1806
      %s1808 = sshll.u32 [#allocation15], 4
      %s1809 = int_to_ptr.vmem [resolvable:$true] %s1808
      %1814 = dma.vmem_to_hbm [thread:$0]  %s1809, 1024, %s10, [#allocation5], 128, 128, 8
    $region73: #{tpu_custom_call.1} parent=1 // pred_fallthru
      _
    // Predicated region
    $region74: #{tpu_custom_call.1} parent=1 // pred_check
      _
    $region75: #{tpu_custom_call.1} parent=1 // pred_check_branch
      %1816 = sbr.rel (0) target = $region77
    $region76: #{tpu_custom_call.1} parent=1 // pred_region
      %s1818 = ssub.s32 256, 256
      %1819 = vsyncadd [#allocation17], %s1818
      %s1820 = sshll.u32 [#allocation16], 4
      %s1821 = int_to_ptr.vmem [resolvable:$true] %s1820
      %1826 = dma.vmem_to_hbm [thread:$0]  %s1821, 256, %s11, [#allocation17], 128, 128, 8
    $region77: #{tpu_custom_call.1} parent=1 // pred_fallthru
      _
    // Predicated region
    $region78: #{tpu_custom_call.1} parent=1 // pred_check
      _
    $region79: #{tpu_custom_call.1} parent=1 // pred_check_branch
      %1828 = sbr.rel (0) target = $region81
    $region80: #{tpu_custom_call.1} parent=1 // pred_region
      %1829 = dma.done [#allocation5], 1024
    $region81: #{tpu_custom_call.1} parent=1 // pred_fallthru
      _
    // Predicated region
    $region82: #{tpu_custom_call.1} parent=1 // pred_check
      _
    $region83: #{tpu_custom_call.1} parent=1 // pred_check_branch
      %1831 = sbr.rel (0) target = $region85
    $region84: #{tpu_custom_call.1} parent=1 // pred_region
      %1832 = dma.done [#allocation17], 256
    $region85: #{tpu_custom_call.1} parent=1 // pred_fallthru
      _
    %1833 = vsyncpa [#allocation4], 1
    %1834 = vsyncpa [#allocation7], 1
    %1835 = vsyncpa [#allocation10], 1
    %1836 = vsyncpa [#allocation13], 1
    %1837 = vsyncpa [#allocation5], 1
    %1838 = vsyncpa [#allocation17], 1

</llo_original>
